<compile_context>
chip_gen: v7x
topology: tpu7x:2x2x1
jax: 0.10.0
libtpu: 0.0.40
codegen_flags: <defaults>
</compile_context>

<pallas_src>
import math

import jax
import jax.numpy as jnp
from jax.experimental import pallas as pl
from jax.experimental.pallas import tpu as pltpu

# ---------------- module configuration (from __init__ defaults) -------------
NUM_ENC_XYZ = 6
NUM_ENC_DIR = 4
DIM_XYZ = 3 + 2 * 3 * NUM_ENC_XYZ          # 39
DIM_DIR = 3 + 2 * 3 * NUM_ENC_DIR          # 27
DIM_EXPR = 50                              # use_expression=True
DIM_DEFO = 32                              # embedding_vector_dim
N_LEVELS = 16
N_FEAT_PER_LEVEL = 2
LOG2_HASHMAP = 19
BASE_RES = 16
PER_LEVEL_SCALE = 1.4472692012786865
ENC_DIM = N_LEVELS * N_FEAT_PER_LEVEL      # 32 = encoding.n_output_dims
GEO_FEAT = 15
HIDDEN = 64                                # n_neurons of both tcnn MLPs
SH_DIM = 16                                # SphericalHarmonics degree 4
BASE_IN = ENC_DIM + DIM_EXPR + DIM_DEFO    # 114 -> mlp_base input
HEAD_IN = SH_DIM + GEO_FEAT                # 31  -> mlp_head input
KIN = ENC_DIM + SH_DIM                     # 48  -> fused kernel input width
WIDE = 2 * HIDDEN                          # 128 -> fused layer-0 / layer-1 width


# ------------------------ shared math helpers --------------------------------
def _sh16(x, y, z):
    """tcnn SphericalHarmonics degree-4 basis (16 coeffs); inputs are [N,1]."""
    xy, xz, yz = x * y, x * z, y * z
    x2, y2, z2 = x * x, y * y, z * z
    return [
        jnp.full_like(x, 0.28209479177387814),
        -0.48860251190291987 * y,
        0.48860251190291987 * z,
        -0.48860251190291987 * x,
        1.0925484305920792 * xy,
        -1.0925484305920792 * yz,
        0.94617469575755997 * z2 - 0.31539156525251999,
        -1.0925484305920792 * xz,
        0.54627421529603959 * x2 - 0.54627421529603959 * y2,
        0.59004358992664352 * y * (-3.0 * x2 + y2),
        2.8906114426405538 * xy * z,
        0.45704579946446572 * y * (1.0 - 5.0 * z2),
        0.3731763325901154 * z * (5.0 * z2 - 3.0),
        0.45704579946446572 * x * (1.0 - 5.0 * z2),
        1.4453057213202769 * z * (x2 - y2),
        0.59004358992664352 * x * (-x2 + 3.0 * y2),
    ]


# ------------------------------ Pallas kernel ---------------------------------
def make_nerf_kernel(bf16_act):
    """bf16_act: run ReLU/activation storage in bf16 (v6e/v7x), f32 on v5e."""
    act_dt = jnp.bfloat16 if bf16_act else jnp.float32

    def nerf_kernel(inp_ref, bias_ref, wcat_ref, w1cat_ref, h1_ref, h2p_ref,
                    out_ref):
        inp = inp_ref[...]                                      # [T,48] bf16

        # Fused layer-0 of both MLPs (block-diagonal Wcat[48,128]):
        #   lanes 0:64   = enc @ W0x      (mlp_base layer-0, pre-bias)
        #   lanes 64:128 = sh  @ H0s      (mlp_head layer-0, SH part)
        tmp = jnp.dot(inp, wcat_ref[...],
                      preferred_element_type=jnp.float32)       # [T,128] f32
        hidden_pre = tmp[:, :HIDDEN] + bias_ref[...]            # [T,64] f32
        sh_head = tmp[:, HIDDEN:]                               # [T,64] f32

        hidden = jnp.maximum(hidden_pre.astype(act_dt), 0).astype(jnp.bfloat16)

        # mlp_base layer-1 fused with (W1[:,1:] @ H0g) pre-composition:
        #   lane 0       = density logit (pre trunc_exp)
        #   lanes 64:128 = geo contribution to mlp_head layer-0
        h2 = jnp.dot(hidden, w1cat_ref[...],
                     preferred_element_type=jnp.float32)        # [T,128] f32
        alpha = jnp.exp(h2[:, 0:1])           # trunc_exp forward == exp (f32)
        head0 = sh_head + h2[:, HIDDEN:]      # lane-aligned add      [T,64]

        r = jnp.maximum(head0.astype(act_dt), 0).astype(jnp.bfloat16)
        r = jnp.dot(r, h1_ref[...], preferred_element_type=jnp.float32)
        r = jnp.maximum(r.astype(act_dt), 0).astype(jnp.bfloat16)
        # h2p is zero-padded to [64,4] so lane 3 of rgba is 0; alpha goes there.
        rgba = jnp.dot(r, h2p_ref[...],
                       preferred_element_type=jnp.float32)      # [T,4] f32

        lane = jax.lax.broadcasted_iota(jnp.int32, rgba.shape, 1)
        out_ref[...] = jnp.where(lane < 3, rgba,
                                 jnp.broadcast_to(alpha, rgba.shape))

    return nerf_kernel


# ----------------------- hash-grid encoding (plain JAX) -----------------------
def hash_encode(xyz, tables):
    """xyz: [N, DIM_XYZ] float32; tables: [L, 2**LOG2_HASHMAP, 2] (bf16)."""
    n, d = xyz.shape
    primes = jnp.array([1, 2654435761, 805459861, 3674653429,
                        2097192037, 1434869437, 2165219737], dtype=jnp.uint32)
    primes = jnp.tile(primes, (d // primes.shape[0] + 1,))[:d]
    feats = []
    for lvl in range(N_LEVELS):
        res = float(math.floor(BASE_RES * PER_LEVEL_SCALE ** lvl))
        coords = jnp.floor(xyz * res).astype(jnp.int32).astype(jnp.uint32)
        prods = coords * primes[None, :]
        h = jnp.zeros((n,), dtype=jnp.uint32)
        for j in range(d):
            h = jnp.bitwise_xor(h, prods[:, j])
        idx = (h & jnp.uint32((1 << LOG2_HASHMAP) - 1)).astype(jnp.int32)
        feats.append(tables[lvl][idx])                                   # [N,2]
    return jnp.concatenate(feats, axis=-1)                               # [N,32]


# ------------------------------- wrapper --------------------------------------
def _pick_tile(n):
    """Pick the largest power-of-two tile such that the grid is even and has
    >= 4 steps (>= 2 per v7x TensorCore so the input DMA can pipeline);
    fall back to even grid >= 2, then any divisor."""
    cands = (2048, 1024, 512, 256, 128, 64, 32, 16, 8)
    for t in cands:
        g = n // t
        if n % t == 0 and g >= 4 and g % 2 == 0:
            return t
    for t in cands:
        g = n // t
        if n % t == 0 and g >= 2 and g % 2 == 0:
            return t
    for t in cands:
        if n % t == 0:
            return t
    raise ValueError("number of samples must be a multiple of 8")


def _bf16_elementwise_ok():
    """bf16-native VALUs exist on v6e / v7x; keep f32 elementwise on v5e."""
    try:
        kind = jax.devices()[0].device_kind.lower()
    except Exception:
        return False
    return ("v6" in kind) or ("v7" in kind)


def face_nerf_forward(x, expression, deformation_codes, params):
    n = x.shape[0]
    xyz = x[:, :DIM_XYZ].astype(jnp.float32)
    # direction_encoding has n_input_dims=3: the raw view direction is the
    # first 3 (identity) components of the dir positional encoding.
    dirs3 = x[:, DIM_XYZ:DIM_XYZ + 3].astype(jnp.float32)

    # HashGrid encoding (bf16 table gather) stays in XLA.
    xyz_enc = hash_encode(xyz, params["hash_tables"])                    # bf16

    # SH deg-4 basis of the view direction. The module's (d+1)/2 then tcnn's
    # 2x-1 is an exact identity, so dirs are used directly. Evaluated densely
    # here (XLA fuses it with the input concat) so the kernel consumes it via
    # the fused layer-0 matmul.
    sh = jnp.concatenate(_sh16(dirs3[:, 0:1], dirs3[:, 1:2], dirs3[:, 2:3]),
                         axis=-1)                                        # [N,16]

    # One lane-contiguous bf16 kernel input: [enc(32) | sh(16)].
    inp = jnp.concatenate([xyz_enc.astype(jnp.bfloat16),
                           sh.astype(jnp.bfloat16)], axis=-1)            # [N,48]

    # expression/deformation rows are constant across samples -> fold their
    # mlp_base layer-0 contribution into a single [1,HIDDEN] f32 bias.
    expr2 = expression.reshape(1, DIM_EXPR).astype(jnp.float32)
    defo2 = deformation_codes.reshape(1, DIM_DEFO).astype(jnp.float32)
    bias = (expr2 * (1.0 / 3.0)) @ params["w0e"] + defo2 @ params["w0d"]

    # Block-diagonal fused layer-0 weight: [48,128] bf16.
    wcat = jnp.zeros((KIN, WIDE), jnp.float32)
    wcat = wcat.at[:ENC_DIM, :HIDDEN].set(params["w0x"])
    wcat = wcat.at[ENC_DIM:, HIDDEN:].set(params["h0s"])
    wcat = wcat.astype(jnp.bfloat16)

    # mlp_base layer-1 fused with the head layer-0 geo part:
    #   col 0       : w1[:, 0]               (density logit)
    #   cols 64:128 : w1[:, 1:16] @ h0g      (pre-composed; no nonlinearity
    #                                          between them in the module)
    w1geo = params["w1"][:, 1:] @ params["h0g"]                          # [64,64]
    w1cat = jnp.zeros((HIDDEN, WIDE), jnp.float32)
    w1cat = w1cat.at[:, 0].set(params["w1"][:, 0])
    w1cat = w1cat.at[:, HIDDEN:].set(w1geo)
    w1cat = w1cat.astype(jnp.bfloat16)

    h1 = params["h1"].astype(jnp.bfloat16)
    h2p = jnp.pad(params["h2"], ((0, 0), (0, 1))).astype(jnp.bfloat16)   # [64,4]

    tile = _pick_tile(n)
    row = lambda i: (i, 0)
    full = lambda i: (0, 0)
    kernel = make_nerf_kernel(_bf16_elementwise_ok())
    out = pl.pallas_call(
        kernel,
        out_shape=jax.ShapeDtypeStruct((n, 4), jnp.float32),
        grid=(n // tile,),
        in_specs=[
            pl.BlockSpec((tile, KIN), row),
            pl.BlockSpec((1, HIDDEN), full),
            pl.BlockSpec((KIN, WIDE), full),
            pl.BlockSpec((HIDDEN, WIDE), full),
            pl.BlockSpec((HIDDEN, HIDDEN), full),
            pl.BlockSpec((HIDDEN, 4), full),
        ],
        out_specs=pl.BlockSpec((tile, 4), row),
        compiler_params=pltpu.CompilerParams(
            dimension_semantics=("parallel",)),
    )(inp, bias, wcat, w1cat, h1, h2p)
    return out


# --------------------------- pure-JAX reference --------------------------------
def reference_forward(x, expression, deformation_codes, params):
    n = x.shape[0]
    xyz = x[:, :DIM_XYZ].astype(jnp.float32)
    dirs3 = x[:, DIM_XYZ:DIM_XYZ + 3].astype(jnp.float32)
    enc = hash_encode(xyz, params["hash_tables"]).astype(jnp.float32)
    expr = jnp.broadcast_to(expression.reshape(1, -1) / 3.0, (n, DIM_EXPR))
    defo = jnp.broadcast_to(deformation_codes.reshape(1, -1), (n, DIM_DEFO))
    base_in = jnp.concatenate([enc, expr, defo], axis=-1)
    w0 = jnp.concatenate([params["w0x"], params["w0e"], params["w0d"]], axis=0)
    h = jnp.maximum(base_in @ w0, 0.0) @ params["w1"]
    alpha = jnp.exp(h[:, :1])
    geo = h[:, 1:]
    d = ((dirs3 + 1.0) / 2.0) * 2.0 - 1.0
    sh = jnp.concatenate(_sh16(d[:, 0:1], d[:, 1:2], d[:, 2:3]), axis=-1)
    head_in = jnp.concatenate([sh, geo], axis=-1)
    h0 = jnp.concatenate([params["h0s"], params["h0g"]], axis=0)
    r = jnp.maximum(head_in @ h0, 0.0)
    r = jnp.maximum(r @ params["h1"], 0.0)
    rgb = r @ params["h2"]
    return jnp.concatenate([rgb, alpha], axis=-1)


# ------------------------------ param init -------------------------------------
def init_params(key):
    ks = jax.random.split(key, 8)

    def w(k, shape, fan_in):
        return jax.random.normal(k, shape, jnp.float32) / math.sqrt(fan_in)

    return {
        # tcnn HashGrid tables: init uniform(-1e-4, 1e-4), 2 features/level,
        # stored bf16 (tcnn keeps them in fp16) to halve gather HBM traffic.
        "hash_tables": jax.random.uniform(
            ks[0], (N_LEVELS, 1 << LOG2_HASHMAP, N_FEAT_PER_LEVEL),
            minval=-1e-4, maxval=1e-4,
            dtype=jnp.float32).astype(jnp.bfloat16),
        # mlp_base layer0 (114 -> 64), stored split along input features.
        "w0x": w(ks[1], (ENC_DIM, HIDDEN), BASE_IN),
        "w0e": w(ks[2], (DIM_EXPR, HIDDEN), BASE_IN),
        "w0d": w(ks[3], (DIM_DEFO, HIDDEN), BASE_IN),
        # mlp_base layer1 (64 -> 1 + geo_feat_dim).
        "w1": w(ks[4], (HIDDEN, 1 + GEO_FEAT), HIDDEN),
        # mlp_head layer0 (31 -> 64), split into SH part and geo part.
        "h0s": w(ks[5], (SH_DIM, HIDDEN), HEAD_IN),
        "h0g": w(ks[6], (GEO_FEAT, HIDDEN), HEAD_IN),
        # mlp_head layers 1, 2.
        "h1": w(ks[7], (HIDDEN, HIDDEN), HIDDEN),
        "h2": w(jax.random.fold_in(key, 99), (HIDDEN, 3), HIDDEN),
    }


if __name__ == "__main__":
    key = jax.random.PRNGKey(0)
    k_x, k_e, k_d, k_p = jax.random.split(key, 4)

    N = 2048  # ray samples -> tile 512, grid 4 (2 steps per v7x TensorCore)
    x = jax.random.normal(k_x, (N, DIM_XYZ + DIM_DIR), jnp.float32) * 0.5
    expression = jax.random.normal(k_e, (DIM_EXPR,), jnp.float32)
    deformation_codes = jax.random.normal(k_d, (DIM_DEFO,), jnp.float32)
    params = init_params(k_p)

    out = face_nerf_forward(x, expression, deformation_codes, params)
    out = jax.block_until_ready(out)

    ref = jax.block_until_ready(
        reference_forward(x, expression, deformation_codes, params))
    assert out.shape == (N, 4) and out.dtype == jnp.float32
    assert bool(jnp.all(jnp.isfinite(out)))
    assert bool(jnp.allclose(out, ref, atol=5e-2, rtol=5e-2)), (
        "kernel/reference mismatch: max abs diff = "
        f"{float(jnp.max(jnp.abs(out - ref)))}")
    print("KERNEL_OK")
</pallas_src>

<mosaic_0001>
module attributes {stable_mosaic.version = 11 : i64} {
  func.func @nerf_kernel(%arg0: i32, %arg1: memref<512x48xbf16, #tpu.memory_space<vmem>>, %arg2: memref<1x64xf32, #tpu.memory_space<vmem>>, %arg3: memref<48x128xbf16, #tpu.memory_space<vmem>>, %arg4: memref<64x128xbf16, #tpu.memory_space<vmem>>, %arg5: memref<64x64xbf16, #tpu.memory_space<vmem>>, %arg6: memref<64x4xbf16, #tpu.memory_space<vmem>>, %arg7: memref<512x4xf32, #tpu.memory_space<vmem>>) attributes {dimension_semantics = [#tpu.dimension_semantics<parallel>], iteration_bounds = array<i64: 4>, scalar_prefetch = 0 : i64, scratch_operands = 0 : i64, tpu.core_type = #tpu.core_type<tc>, window_params = [{transform_indices = @transform_0, window_bounds = array<i64: 512, 48>}, {pipeline_mode = #tpu.pipeline_mode<synchronous>, transform_indices = @transform_1, window_bounds = array<i64: 1, 64>}, {pipeline_mode = #tpu.pipeline_mode<synchronous>, transform_indices = @transform_2, window_bounds = array<i64: 48, 128>}, {pipeline_mode = #tpu.pipeline_mode<synchronous>, transform_indices = @transform_3, window_bounds = array<i64: 64, 128>}, {pipeline_mode = #tpu.pipeline_mode<synchronous>, transform_indices = @transform_4, window_bounds = array<i64: 64, 64>}, {pipeline_mode = #tpu.pipeline_mode<synchronous>, transform_indices = @transform_5, window_bounds = array<i64: 64, 4>}, {transform_indices = @transform_6, window_bounds = array<i64: 512, 4>}]} {
    %c0 = arith.constant 0 : index
    %c0_0 = arith.constant 0 : index
    %0 = vector.load %arg1[%c0, %c0_0] : memref<512x48xbf16, #tpu.memory_space<vmem>>, vector<512x48xbf16>
    %c0_1 = arith.constant 0 : index
    %c0_2 = arith.constant 0 : index
    %1 = vector.load %arg3[%c0_1, %c0_2] : memref<48x128xbf16, #tpu.memory_space<vmem>>, vector<48x128xbf16>
    %cst = arith.constant dense<0.000000e+00> : vector<512x128xf32>
    %2 = tpu.matmul %0, %1, %cst {dimension_numbers = #tpu.dot_dimension_numbers<[1], [0], [0], [1], [0, 0, 1, 1], [], []>} : vector<512x48xbf16>, vector<48x128xbf16>, vector<512x128xf32> -> vector<512x128xf32>
    %3 = vector.extract_strided_slice %2 {offsets = [0, 0], sizes = [512, 64], strides = [1, 1]} : vector<512x128xf32> to vector<512x64xf32>
    %c0_3 = arith.constant 0 : index
    %c0_4 = arith.constant 0 : index
    %4 = vector.load %arg2[%c0_3, %c0_4] : memref<1x64xf32, #tpu.memory_space<vmem>>, vector<1x64xf32>
    %5 = vector.broadcast %4 : vector<1x64xf32> to vector<512x64xf32>
    %6 = arith.addf %3, %5 : vector<512x64xf32>
    %7 = vector.extract_strided_slice %2 {offsets = [0, 64], sizes = [512, 64], strides = [1, 1]} : vector<512x128xf32> to vector<512x64xf32>
    %cst_5 = arith.constant 0.000000e+00 : f32
    %8 = vector.broadcast %cst_5 : f32 to vector<512x64xf32>
    %9 = arith.maximumf %6, %8 : vector<512x64xf32>
    %10 = arith.truncf %9 : vector<512x64xf32> to vector<512x64xbf16>
    %c0_6 = arith.constant 0 : index
    %c0_7 = arith.constant 0 : index
    %11 = vector.load %arg4[%c0_6, %c0_7] : memref<64x128xbf16, #tpu.memory_space<vmem>>, vector<64x128xbf16>
    %cst_8 = arith.constant dense<0.000000e+00> : vector<512x128xf32>
    %12 = tpu.matmul %10, %11, %cst_8 {dimension_numbers = #tpu.dot_dimension_numbers<[1], [0], [0], [1], [0, 0, 1, 1], [], []>} : vector<512x64xbf16>, vector<64x128xbf16>, vector<512x128xf32> -> vector<512x128xf32>
    %13 = vector.extract_strided_slice %12 {offsets = [0, 0], sizes = [512, 1], strides = [1, 1]} : vector<512x128xf32> to vector<512x1xf32>
    %14 = math.exp %13 : vector<512x1xf32>
    %15 = vector.extract_strided_slice %12 {offsets = [0, 64], sizes = [512, 64], strides = [1, 1]} : vector<512x128xf32> to vector<512x64xf32>
    %16 = arith.addf %7, %15 : vector<512x64xf32>
    %cst_9 = arith.constant 0.000000e+00 : f32
    %17 = vector.broadcast %cst_9 : f32 to vector<512x64xf32>
    %18 = arith.maximumf %16, %17 : vector<512x64xf32>
    %19 = arith.truncf %18 : vector<512x64xf32> to vector<512x64xbf16>
    %c0_10 = arith.constant 0 : index
    %c0_11 = arith.constant 0 : index
    %20 = vector.load %arg5[%c0_10, %c0_11] : memref<64x64xbf16, #tpu.memory_space<vmem>>, vector<64x64xbf16>
    %cst_12 = arith.constant dense<0.000000e+00> : vector<512x64xf32>
    %21 = tpu.matmul %19, %20, %cst_12 {dimension_numbers = #tpu.dot_dimension_numbers<[1], [0], [0], [1], [0, 0, 1, 1], [], []>} : vector<512x64xbf16>, vector<64x64xbf16>, vector<512x64xf32> -> vector<512x64xf32>
    %cst_13 = arith.constant 0.000000e+00 : f32
    %22 = vector.broadcast %cst_13 : f32 to vector<512x64xf32>
    %23 = arith.maximumf %21, %22 : vector<512x64xf32>
    %24 = arith.truncf %23 : vector<512x64xf32> to vector<512x64xbf16>
    %c0_14 = arith.constant 0 : index
    %c0_15 = arith.constant 0 : index
    %25 = vector.load %arg6[%c0_14, %c0_15] : memref<64x4xbf16, #tpu.memory_space<vmem>>, vector<64x4xbf16>
    %cst_16 = arith.constant dense<0.000000e+00> : vector<512x4xf32>
    %26 = tpu.matmul %24, %25, %cst_16 {dimension_numbers = #tpu.dot_dimension_numbers<[1], [0], [0], [1], [0, 0, 1, 1], [], []>} : vector<512x64xbf16>, vector<64x4xbf16>, vector<512x4xf32> -> vector<512x4xf32>
    %27 = tpu.iota {dimensions = array<i32: 1>} : vector<512x4xi32>
    %c3_i32 = arith.constant 3 : i32
    %28 = vector.broadcast %c3_i32 : i32 to vector<512x4xi32>
    %29 = arith.cmpi slt, %27, %28 : vector<512x4xi32>
    %30 = vector.shape_cast %14 : vector<512x1xf32> to vector<512x1xf32>
    %31 = vector.broadcast %30 : vector<512x1xf32> to vector<512x4xf32>
    %32 = arith.select %29, %26, %31 : vector<512x4xi1>, vector<512x4xf32>
    %c0_17 = arith.constant 0 : index
    %c0_18 = arith.constant 0 : index
    %33 = vector.load %arg7[%c0_17, %c0_18] : memref<512x4xf32, #tpu.memory_space<vmem>>, vector<512x4xf32>
    tpu.vector_store %arg7[%c0_17, %c0_18], %32 {strides = array<i32>} : memref<512x4xf32, #tpu.memory_space<vmem>>, vector<512x4xf32>,
    return
  }
  func.func @transform_0(%arg0: i32) -> (i32, i32) {
    %c0_i32 = arith.constant 0 : i32
    %c0_i32_0 = arith.constant 0 : i32
    return %arg0, %c0_i32 : i32, i32
  }
  func.func @transform_1(%arg0: i32) -> (i32, i32) {
    %c0_i32 = arith.constant 0 : i32
    %c0_i32_0 = arith.constant 0 : i32
    %c0_i32_1 = arith.constant 0 : i32
    return %c0_i32, %c0_i32_0 : i32, i32
  }
  func.func @transform_2(%arg0: i32) -> (i32, i32) {
    %c0_i32 = arith.constant 0 : i32
    %c0_i32_0 = arith.constant 0 : i32
    %c0_i32_1 = arith.constant 0 : i32
    return %c0_i32, %c0_i32_0 : i32, i32
  }
  func.func @transform_3(%arg0: i32) -> (i32, i32) {
    %c0_i32 = arith.constant 0 : i32
    %c0_i32_0 = arith.constant 0 : i32
    %c0_i32_1 = arith.constant 0 : i32
    return %c0_i32, %c0_i32_0 : i32, i32
  }
  func.func @transform_4(%arg0: i32) -> (i32, i32) {
    %c0_i32 = arith.constant 0 : i32
    %c0_i32_0 = arith.constant 0 : i32
    %c0_i32_1 = arith.constant 0 : i32
    return %c0_i32, %c0_i32_0 : i32, i32
  }
  func.func @transform_5(%arg0: i32) -> (i32, i32) {
    %c0_i32 = arith.constant 0 : i32
    %c0_i32_0 = arith.constant 0 : i32
    %c0_i32_1 = arith.constant 0 : i32
    return %c0_i32, %c0_i32_0 : i32, i32
  }
  func.func @transform_6(%arg0: i32) -> (i32, i32) {
    %c0_i32 = arith.constant 0 : i32
    %c0_i32_0 = arith.constant 0 : i32
    return %arg0, %c0_i32 : i32, i32
  }
}

</mosaic_0001>

<llo_original>
// kernel: tpu_custom_call.1
$region0: #{tpu_custom_call.1}
  #allocation0 [shape = 'u32[]', space=smem, size = 0x4, offset = 0x4, fixed_abs, tag = 'smem constant byte address 0x4 - core index']
  #allocation1 [shape = 'u32[144,128]{1,0:T(1,128)}', space=vmem, size = 0x12000, scoped, tag = 'internal scratch']
  %s0 = inlined_call_operand.vmem [shape: bf16[2048,48], index: 0, kind: input, shape index: {}]
  %s1 = inlined_call_operand.vmem [shape: f32[1,64], index: 1, kind: input, shape index: {}]
  %s2 = inlined_call_operand.vmem [shape: bf16[48,128], index: 2, kind: input, shape index: {}]
  %s3 = inlined_call_operand.vmem [shape: bf16[64,128], index: 3, kind: input, shape index: {}]
  %s4 = inlined_call_operand.vmem [shape: bf16[64,64], index: 4, kind: input, shape index: {}]
  %s5 = inlined_call_operand.vmem [shape: bf16[64,4], index: 5, kind: input, shape index: {}]
  %s6 = inlined_call_operand.vmem [shape: f32[2048,4], index: 6, kind: output, shape index: {}]
  %s7 = sld [smem:[#allocation0]]
  $region57: #{tpu_custom_call.1} parent=0
    _
  %s9 = ssub.s32 1, %s7
  %s10 = scalar_select 0, %s9, %s7
  loop: start=0, step=1, limit=6
  $region2: #{tpu_custom_call.1} parent=0 // loop_pre_header
    _
  $region3: #{tpu_custom_call.1} parent=0 // loop_header
    %s12 = sphi 0, %s16
    %p13 = scmp.ge.s32.totalorder %s12, 6
    %s22 = sphi 0, %s24
    %s25 = sphi 0, %s22
    %s26 = sphi 0, %s25
    %s42 = sphi 0, %s26
    %s46 = sphi 0, %s46
    %s48 = sphi 0, %s46
    %s49 = sphi 0, %s48
    %s63 = sphi 0, %s49
    %s67 = sphi 0, %s67
    %s69 = sphi 0, %s67
    %s70 = sphi 0, %s69
    %s84 = sphi 0, %s70
    %s88 = sphi 0, %s88
    %s90 = sphi 0, %s88
    %s91 = sphi 0, %s90
    %s105 = sphi 0, %s91
    %s109 = sphi 0, %s109
    %s111 = sphi 0, %s109
    %s112 = sphi 0, %s111
    %s126 = sphi 0, %s112
    %s130 = sphi 0, %s130
    %s132 = sphi 0, %s130
    %s133 = sphi 0, %s132
    %s147 = sphi 0, %s133
    %s153 = sphi 0, %s155
    %s156 = sphi 0, %s153
    %s157 = sphi 0, %s156
    %s173 = sphi 0, %s157
  $region4: #{tpu_custom_call.1} parent=0 // loop_header_branch
    %15 = sbr.rel (%p13) target = $region8
  $region5: #{tpu_custom_call.1} parent=0 // loop_body
    %s17 = ssub.s32 %s12, 1
    %s18 = ssub.s32 %s12, 2
    %s19 = sadd.s32 %s12, 1
    %s20 = ssub.s32 %s12, %s19
    %p21 = scmp.eq.s32.totalorder %s20, 0
    %s23 = sadd.s32 %s22, 1
    %s24 = scalar_select %p21, %s22, %s23
    %p27 = pneg %p21
    %p28 = scmp.eq.s32.totalorder %s12, 3
    %p29 = por %p27, %p28
    %p30 = scmp.ne.s32.totalorder %s22, %s25
    %p31 = scmp.eq.s32.totalorder %s12, 0
    %p32 = por %p30, %p31
    %p33 = scmp.ne.s32.totalorder %s22, %s25
    %p34 = scmp.eq.s32.totalorder %s17, 3
    %p35 = por %p33, %p34
    %p36 = scmp.ne.s32.totalorder %s25, %s26
    %p37 = scmp.eq.s32.totalorder %s17, 0
    %p38 = por %p36, %p37
    %p39 = scmp.ne.s32.totalorder %s25, %s26
    %p40 = scmp.eq.s32.totalorder %s18, 3
    %p41 = por %p39, %p40
    %p43 = scmp.ne.s32.totalorder %s26, %s42
    %p44 = scmp.eq.s32.totalorder %s18, 0
    %p45 = por %p43, %p44
    %s47 = sadd.s32 %s46, 1
    %p50 = scmp.eq.s32.totalorder %s12, 3
    %p51 = scmp.ne.s32.totalorder %s46, %s48
    %p52 = scmp.eq.s32.totalorder %s12, 0
    %p53 = por %p51, %p52
    %p54 = scmp.ne.s32.totalorder %s46, %s48
    %p55 = scmp.eq.s32.totalorder %s17, 3
    %p56 = por %p54, %p55
    %p57 = scmp.ne.s32.totalorder %s48, %s49
    %p58 = scmp.eq.s32.totalorder %s17, 0
    %p59 = por %p57, %p58
    %p60 = scmp.ne.s32.totalorder %s48, %s49
    %p61 = scmp.eq.s32.totalorder %s18, 3
    %p62 = por %p60, %p61
    %p64 = scmp.ne.s32.totalorder %s49, %s63
    %p65 = scmp.eq.s32.totalorder %s18, 0
    %p66 = por %p64, %p65
    %s68 = sadd.s32 %s67, 1
    %p71 = scmp.eq.s32.totalorder %s12, 3
    %p72 = scmp.ne.s32.totalorder %s67, %s69
    %p73 = scmp.eq.s32.totalorder %s12, 0
    %p74 = por %p72, %p73
    %p75 = scmp.ne.s32.totalorder %s67, %s69
    %p76 = scmp.eq.s32.totalorder %s17, 3
    %p77 = por %p75, %p76
    %p78 = scmp.ne.s32.totalorder %s69, %s70
    %p79 = scmp.eq.s32.totalorder %s17, 0
    %p80 = por %p78, %p79
    %p81 = scmp.ne.s32.totalorder %s69, %s70
    %p82 = scmp.eq.s32.totalorder %s18, 3
    %p83 = por %p81, %p82
    %p85 = scmp.ne.s32.totalorder %s70, %s84
    %p86 = scmp.eq.s32.totalorder %s18, 0
    %p87 = por %p85, %p86
    %s89 = sadd.s32 %s88, 1
    %p92 = scmp.eq.s32.totalorder %s12, 3
    %p93 = scmp.ne.s32.totalorder %s88, %s90
    %p94 = scmp.eq.s32.totalorder %s12, 0
    %p95 = por %p93, %p94
    %p96 = scmp.ne.s32.totalorder %s88, %s90
    %p97 = scmp.eq.s32.totalorder %s17, 3
    %p98 = por %p96, %p97
    %p99 = scmp.ne.s32.totalorder %s90, %s91
    %p100 = scmp.eq.s32.totalorder %s17, 0
    %p101 = por %p99, %p100
    %p102 = scmp.ne.s32.totalorder %s90, %s91
    %p103 = scmp.eq.s32.totalorder %s18, 3
    %p104 = por %p102, %p103
    %p106 = scmp.ne.s32.totalorder %s91, %s105
    %p107 = scmp.eq.s32.totalorder %s18, 0
    %p108 = por %p106, %p107
    %s110 = sadd.s32 %s109, 1
    %p113 = scmp.eq.s32.totalorder %s12, 3
    %p114 = scmp.ne.s32.totalorder %s109, %s111
    %p115 = scmp.eq.s32.totalorder %s12, 0
    %p116 = por %p114, %p115
    %p117 = scmp.ne.s32.totalorder %s109, %s111
    %p118 = scmp.eq.s32.totalorder %s17, 3
    %p119 = por %p117, %p118
    %p120 = scmp.ne.s32.totalorder %s111, %s112
    %p121 = scmp.eq.s32.totalorder %s17, 0
    %p122 = por %p120, %p121
    %p123 = scmp.ne.s32.totalorder %s111, %s112
    %p124 = scmp.eq.s32.totalorder %s18, 3
    %p125 = por %p123, %p124
    %p127 = scmp.ne.s32.totalorder %s112, %s126
    %p128 = scmp.eq.s32.totalorder %s18, 0
    %p129 = por %p127, %p128
    %s131 = sadd.s32 %s130, 1
    %p134 = scmp.eq.s32.totalorder %s12, 3
    %p135 = scmp.ne.s32.totalorder %s130, %s132
    %p136 = scmp.eq.s32.totalorder %s12, 0
    %p137 = por %p135, %p136
    %p138 = scmp.ne.s32.totalorder %s130, %s132
    %p139 = scmp.eq.s32.totalorder %s17, 3
    %p140 = por %p138, %p139
    %p141 = scmp.ne.s32.totalorder %s132, %s133
    %p142 = scmp.eq.s32.totalorder %s17, 0
    %p143 = por %p141, %p142
    %p144 = scmp.ne.s32.totalorder %s132, %s133
    %p145 = scmp.eq.s32.totalorder %s18, 3
    %p146 = por %p144, %p145
    %p148 = scmp.ne.s32.totalorder %s133, %s147
    %p149 = scmp.eq.s32.totalorder %s18, 0
    %p150 = por %p148, %p149
    %s151 = ssub.s32 %s12, %s19
    %p152 = scmp.eq.s32.totalorder %s151, 0
    %s154 = sadd.s32 %s153, 1
    %s155 = scalar_select %p152, %s153, %s154
    %p158 = pneg %p152
    %p159 = scmp.eq.s32.totalorder %s12, 3
    %p160 = por %p158, %p159
    %p161 = scmp.ne.s32.totalorder %s153, %s156
    %p162 = scmp.eq.s32.totalorder %s12, 0
    %p163 = por %p161, %p162
    %p164 = scmp.ne.s32.totalorder %s153, %s156
    %p165 = scmp.eq.s32.totalorder %s17, 3
    %p166 = por %p164, %p165
    %p167 = scmp.ne.s32.totalorder %s156, %s157
    %p168 = scmp.eq.s32.totalorder %s17, 0
    %p169 = por %p167, %p168
    %p170 = scmp.ne.s32.totalorder %s156, %s157
    %p171 = scmp.eq.s32.totalorder %s18, 3
    %p172 = por %p170, %p171
    %p174 = scmp.ne.s32.totalorder %s157, %s173
    %p175 = scmp.eq.s32.totalorder %s18, 0
    %p176 = por %p174, %p175
    %p177 = scmp.le.s32.totalorder 1, %s12
    %p178 = scmp.lt.s32.totalorder %s12, 5
    %p179 = pnand %p177, %p178
    %p180 = pneg %p179
    // Predicated region
    $region9: #{tpu_custom_call.1} parent=5 // pred_check
      _
    $region10: #{tpu_custom_call.1} parent=5 // pred_check_branch
      %182 = sbr.rel (%p179) target = $region12
    $region11: #{tpu_custom_call.1} parent=5 // pred_region
      %s183 = ssub.s32 %s12, 1
      // Predicated region
      $region13: #{tpu_custom_call.1} parent=11 // pred_check
        %p184 = pneg %p59
      $region14: #{tpu_custom_call.1} parent=11 // pred_check_branch
        %186 = sbr.rel (%p184) target = $region16
      $region15: #{tpu_custom_call.1} parent=11 // pred_region
        _
      $region16: #{tpu_custom_call.1} parent=11 // pred_fallthru
        _
      // Predicated region
      $region17: #{tpu_custom_call.1} parent=11 // pred_check
        %p187 = pneg %p80
      $region18: #{tpu_custom_call.1} parent=11 // pred_check_branch
        %189 = sbr.rel (%p187) target = $region20
      $region19: #{tpu_custom_call.1} parent=11 // pred_region
        _
      $region20: #{tpu_custom_call.1} parent=11 // pred_fallthru
        _
      // Predicated region
      $region21: #{tpu_custom_call.1} parent=11 // pred_check
        %p190 = pneg %p101
      $region22: #{tpu_custom_call.1} parent=11 // pred_check_branch
        %192 = sbr.rel (%p190) target = $region24
      $region23: #{tpu_custom_call.1} parent=11 // pred_region
        _
      $region24: #{tpu_custom_call.1} parent=11 // pred_fallthru
        _
      // Predicated region
      $region25: #{tpu_custom_call.1} parent=11 // pred_check
        %p193 = pneg %p122
      $region26: #{tpu_custom_call.1} parent=11 // pred_check_branch
        %195 = sbr.rel (%p193) target = $region28
      $region27: #{tpu_custom_call.1} parent=11 // pred_region
        _
      $region28: #{tpu_custom_call.1} parent=11 // pred_fallthru
        _
      // Predicated region
      $region29: #{tpu_custom_call.1} parent=11 // pred_check
        %p196 = pneg %p143
      $region30: #{tpu_custom_call.1} parent=11 // pred_check_branch
        %198 = sbr.rel (%p196) target = $region32
      $region31: #{tpu_custom_call.1} parent=11 // pred_region
        _
      $region32: #{tpu_custom_call.1} parent=11 // pred_fallthru
        _
    $region12: #{tpu_custom_call.1} parent=5 // pred_fallthru
      _
    %p199 = scmp.lt.s32.totalorder %s12, 4
    // Predicated region
    $region33: #{tpu_custom_call.1} parent=5 // pred_check
      %p200 = pneg %p199
    $region34: #{tpu_custom_call.1} parent=5 // pred_check_branch
      %202 = sbr.rel (%p200) target = $region36
    $region35: #{tpu_custom_call.1} parent=5 // pred_region
      // Predicated region
      $region37: #{tpu_custom_call.1} parent=35 // pred_check
        %p203 = pneg %p32
      $region38: #{tpu_custom_call.1} parent=35 // pred_check_branch
        %205 = sbr.rel (%p203) target = $region40
      $region39: #{tpu_custom_call.1} parent=35 // pred_region
        %s206 = smul.u32 64, %s12
        %p207 = scmp.lt.s32.totalorder %s206, 255
        %s208 = scalar_select %p207, %s206, 255
        %s209 = smul.addr %s208, 4
        %s210 = scalar_lea.vmem %s0, %s209
        %s211 = smul.u32 64, %s12
      $region40: #{tpu_custom_call.1} parent=35 // pred_fallthru
        _
    $region36: #{tpu_custom_call.1} parent=5 // pred_fallthru
      _
    %p212 = scmp.le.s32.totalorder 1, %s12
    %p213 = scmp.lt.s32.totalorder %s12, 5
    %p214 = pnand %p212, %p213
    %p215 = pneg %p214
    // Predicated region
    $region41: #{tpu_custom_call.1} parent=5 // pred_check
      _
    $region42: #{tpu_custom_call.1} parent=5 // pred_check_branch
      %217 = sbr.rel (%p214) target = $region44
    $region43: #{tpu_custom_call.1} parent=5 // pred_region
      %s218 = ssub.s32 %s12, 1
      %s219 = smul.u32 64, %s17
      %p220 = scmp.lt.s32.totalorder %s219, 255
      %s221 = scalar_select %p220, %s219, 255
      %s222 = smul.addr %s221, 4
      %s223 = scalar_lea.vmem %s0, %s222
      %p224 = pneg %p38
      %p225 = pneg %p35
      %p226 = pneg %p59
      %p227 = pneg %p56
      %p228 = pneg %p80
      %p229 = pneg %p77
      %p230 = pneg %p101
      %p231 = pneg %p98
      %p232 = pneg %p122
      %p233 = pneg %p119
      %p234 = pneg %p143
      %p235 = pneg %p140
      %p236 = pneg %p169
      %p237 = pneg %p166
      %s238 = smul.u32 64, %s17
      %p239 = scmp.lt.s32.totalorder %s238, 255
      %s240 = scalar_select %p239, %s238, 255
      %s241 = smul.addr %s240, 8
      %s242 = scalar_lea.vmem %s6, %s241
      %s243 = smul.u32 64, %s17
      %p244 = scmp.lt.s32.totalorder %s243, 255
      %s245 = scalar_select %p244, %s243, 255
      %s246 = smul.addr %s245, 4
      %s247 = scalar_lea.vmem %s0, %s246
      %s248 = smul.u32 64, %s17
      %s249 = smul.u32 64, %s17
      %p250 = scmp.lt.s32.totalorder %s249, 255
      %s251 = scalar_select %p250, %s249, 255
      %s252 = smul.addr %s251, 8
      %s253 = scalar_lea.vmem %s6, %s252
      %s254 = smul.u32 64, %s17
      %v256 = vld [vmem:[%s247] sm:$0xf]
      %v257 = vld [vmem:[%s247 + $0x4] sm:$0xf]
      %v258 = vld [vmem:[%s247 + $0x8] sm:$0xf]
      %v259 = vld [vmem:[%s247 + $0xc] sm:$0xf]
      %v260 = vld [vmem:[%s247 + $0x10] sm:$0xf]
      %v261 = vld [vmem:[%s247 + $0x14] sm:$0xf]
      %v262 = vld [vmem:[%s247 + $0x18] sm:$0xf]
      %v263 = vld [vmem:[%s247 + $0x1c] sm:$0xf]
      %v264 = vld [vmem:[%s247 + $0x20] sm:$0xf]
      %v265 = vld [vmem:[%s247 + $0x24] sm:$0xf]
      %v266 = vld [vmem:[%s247 + $0x28] sm:$0xf]
      %v267 = vld [vmem:[%s247 + $0x2c] sm:$0xf]
      %v268 = vld [vmem:[%s247 + $0x30] sm:$0xf]
      %v269 = vld [vmem:[%s247 + $0x34] sm:$0xf]
      %v270 = vld [vmem:[%s247 + $0x38] sm:$0xf]
      %v271 = vld [vmem:[%s247 + $0x3c] sm:$0xf]
      %v272 = vld [vmem:[%s247 + $0x40] sm:$0xf]
      %v273 = vld [vmem:[%s247 + $0x44] sm:$0xf]
      %v274 = vld [vmem:[%s247 + $0x48] sm:$0xf]
      %v275 = vld [vmem:[%s247 + $0x4c] sm:$0xf]
      %v276 = vld [vmem:[%s247 + $0x50] sm:$0xf]
      %v277 = vld [vmem:[%s247 + $0x54] sm:$0xf]
      %v278 = vld [vmem:[%s247 + $0x58] sm:$0xf]
      %v279 = vld [vmem:[%s247 + $0x5c] sm:$0xf]
      %v280 = vld [vmem:[%s247 + $0x60] sm:$0xf]
      %v281 = vld [vmem:[%s247 + $0x64] sm:$0xf]
      %v282 = vld [vmem:[%s247 + $0x68] sm:$0xf]
      %v283 = vld [vmem:[%s247 + $0x6c] sm:$0xf]
      %v284 = vld [vmem:[%s247 + $0x70] sm:$0xf]
      %v285 = vld [vmem:[%s247 + $0x74] sm:$0xf]
      %v286 = vld [vmem:[%s247 + $0x78] sm:$0xf]
      %v287 = vld [vmem:[%s247 + $0x7c] sm:$0xf]
      %v288 = vld [vmem:[%s247 + $0x80] sm:$0xf]
      %v289 = vld [vmem:[%s247 + $0x84] sm:$0xf]
      %v290 = vld [vmem:[%s247 + $0x88] sm:$0xf]
      %v291 = vld [vmem:[%s247 + $0x8c] sm:$0xf]
      %v292 = vld [vmem:[%s247 + $0x90] sm:$0xf]
      %v293 = vld [vmem:[%s247 + $0x94] sm:$0xf]
      %v294 = vld [vmem:[%s247 + $0x98] sm:$0xf]
      %v295 = vld [vmem:[%s247 + $0x9c] sm:$0xf]
      %v296 = vld [vmem:[%s247 + $0xa0] sm:$0xf]
      %v297 = vld [vmem:[%s247 + $0xa4] sm:$0xf]
      %v298 = vld [vmem:[%s247 + $0xa8] sm:$0xf]
      %v299 = vld [vmem:[%s247 + $0xac] sm:$0xf]
      %v300 = vld [vmem:[%s247 + $0xb0] sm:$0xf]
      %v301 = vld [vmem:[%s247 + $0xb4] sm:$0xf]
      %v302 = vld [vmem:[%s247 + $0xb8] sm:$0xf]
      %v303 = vld [vmem:[%s247 + $0xbc] sm:$0xf]
      %v304 = vld [vmem:[%s247 + $0xc0] sm:$0xf]
      %v305 = vld [vmem:[%s247 + $0xc4] sm:$0xf]
      %v306 = vld [vmem:[%s247 + $0xc8] sm:$0xf]
      %v307 = vld [vmem:[%s247 + $0xcc] sm:$0xf]
      %v308 = vld [vmem:[%s247 + $0xd0] sm:$0xf]
      %v309 = vld [vmem:[%s247 + $0xd4] sm:$0xf]
      %v310 = vld [vmem:[%s247 + $0xd8] sm:$0xf]
      %v311 = vld [vmem:[%s247 + $0xdc] sm:$0xf]
      %v312 = vld [vmem:[%s247 + $0xe0] sm:$0xf]
      %v313 = vld [vmem:[%s247 + $0xe4] sm:$0xf]
      %v314 = vld [vmem:[%s247 + $0xe8] sm:$0xf]
      %v315 = vld [vmem:[%s247 + $0xec] sm:$0xf]
      %v316 = vld [vmem:[%s247 + $0xf0] sm:$0xf]
      %v317 = vld [vmem:[%s247 + $0xf4] sm:$0xf]
      %v318 = vld [vmem:[%s247 + $0xf8] sm:$0xf]
      %v319 = vld [vmem:[%s247 + $0xfc] sm:$0xf]
      %v320 = vld [vmem:[%s2] sm:$0xf]
      %v321 = vld [vmem:[%s2 + $0x4] sm:$0xf]
      %v322 = vld [vmem:[%s2 + $0x8] sm:$0xf]
      %v323 = vld [vmem:[%s2 + $0xc] sm:$0xf]
      %v324 = vld [vmem:[%s2 + $0x10] sm:$0xf]
      %v325 = vld [vmem:[%s2 + $0x14] sm:$0xf]
      %v390 = vunpack.c.l.b16 %v256
      %v391 = vunpack.c.l.b16 %v257
      %v392 = vunpack.c.l.b16 %v258
      %v393 = vunpack.c.l.b16 %v259
      %v394 = vunpack.c.l.b16 %v260
      %v395 = vunpack.c.l.b16 %v261
      %v396 = vunpack.c.l.b16 %v262
      %v397 = vunpack.c.l.b16 %v263
      %v398 = vunpack.c.l.b16 %v264
      %v399 = vunpack.c.l.b16 %v265
      %v400 = vunpack.c.l.b16 %v266
      %v401 = vunpack.c.l.b16 %v267
      %v402 = vunpack.c.l.b16 %v268
      %v403 = vunpack.c.l.b16 %v269
      %v404 = vunpack.c.l.b16 %v270
      %v405 = vunpack.c.l.b16 %v271
      %v406 = vunpack.c.l.b16 %v272
      %v407 = vunpack.c.l.b16 %v273
      %v408 = vunpack.c.l.b16 %v274
      %v409 = vunpack.c.l.b16 %v275
      %v410 = vunpack.c.l.b16 %v276
      %v411 = vunpack.c.l.b16 %v277
      %v412 = vunpack.c.l.b16 %v278
      %v413 = vunpack.c.l.b16 %v279
      %v414 = vunpack.c.l.b16 %v280
      %v415 = vunpack.c.l.b16 %v281
      %v416 = vunpack.c.l.b16 %v282
      %v417 = vunpack.c.l.b16 %v283
      %v418 = vunpack.c.l.b16 %v284
      %v419 = vunpack.c.l.b16 %v285
      %v420 = vunpack.c.l.b16 %v286
      %v421 = vunpack.c.l.b16 %v287
      %v422 = vunpack.c.l.b16 %v288
      %v423 = vunpack.c.l.b16 %v289
      %v424 = vunpack.c.l.b16 %v290
      %v425 = vunpack.c.l.b16 %v291
      %v426 = vunpack.c.l.b16 %v292
      %v427 = vunpack.c.l.b16 %v293
      %v428 = vunpack.c.l.b16 %v294
      %v429 = vunpack.c.l.b16 %v295
      %v430 = vunpack.c.l.b16 %v296
      %v431 = vunpack.c.l.b16 %v297
      %v432 = vunpack.c.l.b16 %v298
      %v433 = vunpack.c.l.b16 %v299
      %v434 = vunpack.c.l.b16 %v300
      %v435 = vunpack.c.l.b16 %v301
      %v436 = vunpack.c.l.b16 %v302
      %v437 = vunpack.c.l.b16 %v303
      %v438 = vunpack.c.l.b16 %v304
      %v439 = vunpack.c.l.b16 %v305
      %v440 = vunpack.c.l.b16 %v306
      %v441 = vunpack.c.l.b16 %v307
      %v442 = vunpack.c.l.b16 %v308
      %v443 = vunpack.c.l.b16 %v309
      %v444 = vunpack.c.l.b16 %v310
      %v445 = vunpack.c.l.b16 %v311
      %v446 = vunpack.c.l.b16 %v312
      %v447 = vunpack.c.l.b16 %v313
      %v448 = vunpack.c.l.b16 %v314
      %v449 = vunpack.c.l.b16 %v315
      %v450 = vunpack.c.l.b16 %v316
      %v451 = vunpack.c.l.b16 %v317
      %v452 = vunpack.c.l.b16 %v318
      %v453 = vunpack.c.l.b16 %v319
      %v454 = vpack.c.b16 %v391, %v390
      %v455 = vpack.c.b16 %v393, %v392
      %v456 = vpack.c.b16 %v395, %v394
      %v457 = vpack.c.b16 %v397, %v396
      %v458 = vpack.c.b16 %v399, %v398
      %v459 = vpack.c.b16 %v401, %v400
      %v460 = vpack.c.b16 %v403, %v402
      %v461 = vpack.c.b16 %v405, %v404
      %v462 = vpack.c.b16 %v407, %v406
      %v463 = vpack.c.b16 %v409, %v408
      %v464 = vpack.c.b16 %v411, %v410
      %v465 = vpack.c.b16 %v413, %v412
      %v466 = vpack.c.b16 %v415, %v414
      %v467 = vpack.c.b16 %v417, %v416
      %v468 = vpack.c.b16 %v419, %v418
      %v469 = vpack.c.b16 %v421, %v420
      %v470 = vpack.c.b16 %v423, %v422
      %v471 = vpack.c.b16 %v425, %v424
      %v472 = vpack.c.b16 %v427, %v426
      %v473 = vpack.c.b16 %v429, %v428
      %v474 = vpack.c.b16 %v431, %v430
      %v475 = vpack.c.b16 %v433, %v432
      %v476 = vpack.c.b16 %v435, %v434
      %v477 = vpack.c.b16 %v437, %v436
      %v478 = vpack.c.b16 %v439, %v438
      %v479 = vpack.c.b16 %v441, %v440
      %v480 = vpack.c.b16 %v443, %v442
      %v481 = vpack.c.b16 %v445, %v444
      %v482 = vpack.c.b16 %v447, %v446
      %v483 = vpack.c.b16 %v449, %v448
      %v484 = vpack.c.b16 %v451, %v450
      %v485 = vpack.c.b16 %v453, %v452
      %v492 = vunpack.c.l.b16 %v320
      %v493 = vunpack.c.l.b16 %v321
      %v494 = vunpack.c.l.b16 %v322
      %v495 = vunpack.c.l.b16 %v323
      %v496 = vunpack.c.l.b16 %v324
      %v497 = vunpack.c.l.b16 %v325
      %v498 = vpack.c.b16 %v493, %v492
      %v499 = vpack.c.b16 %v495, %v494
      %v500 = vpack.c.b16 %v497, %v496
      %vm504 = vcmask 392192
      %v506 = vsel %vm504, %v454, 0
      %v509 = vsel %vm504, %v455, 0
      %v512 = vsel %vm504, %v456, 0
      %v515 = vsel %vm504, %v457, 0
      %v518 = vsel %vm504, %v458, 0
      %v521 = vsel %vm504, %v459, 0
      %v524 = vsel %vm504, %v460, 0
      %v527 = vsel %vm504, %v461, 0
      %v530 = vsel %vm504, %v462, 0
      %v533 = vsel %vm504, %v463, 0
      %v536 = vsel %vm504, %v464, 0
      %v539 = vsel %vm504, %v465, 0
      %v542 = vsel %vm504, %v466, 0
      %v545 = vsel %vm504, %v467, 0
      %v548 = vsel %vm504, %v468, 0
      %v551 = vsel %vm504, %v469, 0
      %v554 = vsel %vm504, %v470, 0
      %v557 = vsel %vm504, %v471, 0
      %v560 = vsel %vm504, %v472, 0
      %v563 = vsel %vm504, %v473, 0
      %v566 = vsel %vm504, %v474, 0
      %v569 = vsel %vm504, %v475, 0
      %v572 = vsel %vm504, %v476, 0
      %v575 = vsel %vm504, %v477, 0
      %v578 = vsel %vm504, %v478, 0
      %v581 = vsel %vm504, %v479, 0
      %v584 = vsel %vm504, %v480, 0
      %v587 = vsel %vm504, %v481, 0
      %v590 = vsel %vm504, %v482, 0
      %v593 = vsel %vm504, %v483, 0
      %v596 = vsel %vm504, %v484, 0
      %v599 = vsel %vm504, %v485, 0
      %601 = vmatprep.subr.bf16.mxu0 0
      %602 = vmatpush1.bf16.msra.mxu0 %v498
      %603 = vmatprep.subr.bf16.mxu0 0
      %604 = vmatpush1.bf16.msra.mxu0 %v499
      %605 = vmatprep.subr.bf16.mxu0 0
      %606 = vmatpush1.bf16.msra.mxu0 %v500
      %607 = vmatprep.subr.bf16.mxu0 0
      %608 = vmatpush1.bf16.msra.mxu0 0
      %609 = vmatprep.subr.bf16.mxu0 0
      %610 = vmatpush1.bf16.msra.mxu0 0
      %611 = vmatprep.subr.bf16.mxu0 0
      %612 = vmatpush1.bf16.msra.mxu0 0
      %613 = vmatprep.subr.bf16.mxu0 0
      %614 = vmatpush1.bf16.msra.mxu0 0
      %615 = vmatprep.subr.bf16.mxu0 0
      %616 = vmatpush1.bf16.msra.mxu0 0
      %617 = vmatprep.subr.bf16.mxu0 0
      %618 = vmatpush1.bf16.msra.mxu0 0
      %619 = vmatprep.subr.bf16.mxu0 0
      %620 = vmatpush1.bf16.msra.mxu0 0
      %621 = vmatprep.subr.bf16.mxu0 0
      %622 = vmatpush1.bf16.msra.mxu0 0
      %623 = vmatprep.subr.bf16.mxu0 0
      %624 = vmatpush1.bf16.msra.mxu0 0
      %625 = vmatprep.subr.bf16.mxu0 0
      %626 = vmatpush1.bf16.msra.mxu0 0
      %627 = vmatprep.subr.bf16.mxu0 0
      %628 = vmatpush1.bf16.msra.mxu0 0
      %629 = vmatprep.subr.bf16.mxu0 0
      %630 = vmatpush1.bf16.msra.mxu0 0
      %631 = vmatprep.subr.bf16.mxu0 0
      %632 = vmatpush1.bf16.msra.mxu0 0
      %633 = vmatprep.mubr.bf16.mxu0 0
      %634 = vmatmul.mubr.bf16.gmra.mrb[0].mxu0 %v506
      %v635 = vpop.f32.mrb[0].mxu0
      %v636 = vadd.f32 0.0, %v635
      %v637 = vpop.f32.mrb[0].mxu0
      %v638 = vpop.f32.mrb[0].mxu0
      %v639 = vadd.f32 0.0, %v638
      %v640 = vpop.f32.mrb[0].mxu0
      %641 = vmatprep.mubr.bf16.mxu0 0
      %642 = vmatmul.mubr.bf16.gmra.mrb[0].mxu0 %v509
      %v643 = vpop.f32.mrb[0].mxu0
      %v644 = vadd.f32 0.0, %v643
      %v645 = vpop.f32.mrb[0].mxu0
      %v646 = vpop.f32.mrb[0].mxu0
      %v647 = vadd.f32 0.0, %v646
      %v648 = vpop.f32.mrb[0].mxu0
      %649 = vmatprep.mubr.bf16.mxu0 0
      %650 = vmatmul.mubr.bf16.gmra.mrb[0].mxu0 %v512
      %v651 = vpop.f32.mrb[0].mxu0
      %v652 = vadd.f32 0.0, %v651
      %v653 = vpop.f32.mrb[0].mxu0
      %v654 = vpop.f32.mrb[0].mxu0
      %v655 = vadd.f32 0.0, %v654
      %v656 = vpop.f32.mrb[0].mxu0
      %657 = vmatprep.mubr.bf16.mxu0 0
      %658 = vmatmul.mubr.bf16.gmra.mrb[0].mxu0 %v515
      %v659 = vpop.f32.mrb[0].mxu0
      %v660 = vadd.f32 0.0, %v659
      %v661 = vpop.f32.mrb[0].mxu0
      %v662 = vpop.f32.mrb[0].mxu0
      %v663 = vadd.f32 0.0, %v662
      %v664 = vpop.f32.mrb[0].mxu0
      %665 = vmatprep.mubr.bf16.mxu0 0
      %666 = vmatmul.mubr.bf16.gmra.mrb[0].mxu0 %v518
      %v667 = vpop.f32.mrb[0].mxu0
      %v668 = vadd.f32 0.0, %v667
      %v669 = vpop.f32.mrb[0].mxu0
      %v670 = vpop.f32.mrb[0].mxu0
      %v671 = vadd.f32 0.0, %v670
      %v672 = vpop.f32.mrb[0].mxu0
      %673 = vmatprep.mubr.bf16.mxu0 0
      %674 = vmatmul.mubr.bf16.gmra.mrb[0].mxu0 %v521
      %v675 = vpop.f32.mrb[0].mxu0
      %v676 = vadd.f32 0.0, %v675
      %v677 = vpop.f32.mrb[0].mxu0
      %v678 = vpop.f32.mrb[0].mxu0
      %v679 = vadd.f32 0.0, %v678
      %v680 = vpop.f32.mrb[0].mxu0
      %681 = vmatprep.mubr.bf16.mxu0 0
      %682 = vmatmul.mubr.bf16.gmra.mrb[0].mxu0 %v524
      %v683 = vpop.f32.mrb[0].mxu0
      %v684 = vadd.f32 0.0, %v683
      %v685 = vpop.f32.mrb[0].mxu0
      %v686 = vpop.f32.mrb[0].mxu0
      %v687 = vadd.f32 0.0, %v686
      %v688 = vpop.f32.mrb[0].mxu0
      %689 = vmatprep.mubr.bf16.mxu0 0
      %690 = vmatmul.mubr.bf16.gmra.mrb[0].mxu0 %v527
      %v691 = vpop.f32.mrb[0].mxu0
      %v692 = vadd.f32 0.0, %v691
      %v693 = vpop.f32.mrb[0].mxu0
      %v694 = vpop.f32.mrb[0].mxu0
      %v695 = vadd.f32 0.0, %v694
      %v696 = vpop.f32.mrb[0].mxu0
      %697 = vmatprep.mubr.bf16.mxu0 0
      %698 = vmatmul.mubr.bf16.gmra.mrb[0].mxu0 %v530
      %v699 = vpop.f32.mrb[0].mxu0
      %v700 = vadd.f32 0.0, %v699
      %v701 = vpop.f32.mrb[0].mxu0
      %v702 = vpop.f32.mrb[0].mxu0
      %v703 = vadd.f32 0.0, %v702
      %v704 = vpop.f32.mrb[0].mxu0
      %705 = vmatprep.mubr.bf16.mxu0 0
      %706 = vmatmul.mubr.bf16.gmra.mrb[0].mxu0 %v533
      %v707 = vpop.f32.mrb[0].mxu0
      %v708 = vadd.f32 0.0, %v707
      %v709 = vpop.f32.mrb[0].mxu0
      %v710 = vpop.f32.mrb[0].mxu0
      %v711 = vadd.f32 0.0, %v710
      %v712 = vpop.f32.mrb[0].mxu0
      %713 = vmatprep.mubr.bf16.mxu0 0
      %714 = vmatmul.mubr.bf16.gmra.mrb[0].mxu0 %v536
      %v715 = vpop.f32.mrb[0].mxu0
      %v716 = vadd.f32 0.0, %v715
      %v717 = vpop.f32.mrb[0].mxu0
      %v718 = vpop.f32.mrb[0].mxu0
      %v719 = vadd.f32 0.0, %v718
      %v720 = vpop.f32.mrb[0].mxu0
      %721 = vmatprep.mubr.bf16.mxu0 0
      %722 = vmatmul.mubr.bf16.gmra.mrb[0].mxu0 %v539
      %v723 = vpop.f32.mrb[0].mxu0
      %v724 = vadd.f32 0.0, %v723
      %v725 = vpop.f32.mrb[0].mxu0
      %v726 = vpop.f32.mrb[0].mxu0
      %v727 = vadd.f32 0.0, %v726
      %v728 = vpop.f32.mrb[0].mxu0
      %729 = vmatprep.mubr.bf16.mxu0 0
      %730 = vmatmul.mubr.bf16.gmra.mrb[0].mxu0 %v542
      %v731 = vpop.f32.mrb[0].mxu0
      %v732 = vadd.f32 0.0, %v731
      %v733 = vpop.f32.mrb[0].mxu0
      %v734 = vpop.f32.mrb[0].mxu0
      %v735 = vadd.f32 0.0, %v734
      %v736 = vpop.f32.mrb[0].mxu0
      %737 = vmatprep.mubr.bf16.mxu0 0
      %738 = vmatmul.mubr.bf16.gmra.mrb[0].mxu0 %v545
      %v739 = vpop.f32.mrb[0].mxu0
      %v740 = vadd.f32 0.0, %v739
      %v741 = vpop.f32.mrb[0].mxu0
      %v742 = vpop.f32.mrb[0].mxu0
      %v743 = vadd.f32 0.0, %v742
      %v744 = vpop.f32.mrb[0].mxu0
      %745 = vmatprep.mubr.bf16.mxu0 0
      %746 = vmatmul.mubr.bf16.gmra.mrb[0].mxu0 %v548
      %v747 = vpop.f32.mrb[0].mxu0
      %v748 = vadd.f32 0.0, %v747
      %v749 = vpop.f32.mrb[0].mxu0
      %v750 = vpop.f32.mrb[0].mxu0
      %v751 = vadd.f32 0.0, %v750
      %v752 = vpop.f32.mrb[0].mxu0
      %753 = vmatprep.mubr.bf16.mxu0 0
      %754 = vmatmul.mubr.bf16.gmra.mrb[0].mxu0 %v551
      %v755 = vpop.f32.mrb[0].mxu0
      %v756 = vadd.f32 0.0, %v755
      %v757 = vpop.f32.mrb[0].mxu0
      %v758 = vpop.f32.mrb[0].mxu0
      %v759 = vadd.f32 0.0, %v758
      %v760 = vpop.f32.mrb[0].mxu0
      %761 = vmatprep.mubr.bf16.mxu0 0
      %762 = vmatmul.mubr.bf16.gmra.mrb[0].mxu0 %v554
      %v763 = vpop.f32.mrb[0].mxu0
      %v764 = vadd.f32 0.0, %v763
      %v765 = vpop.f32.mrb[0].mxu0
      %v766 = vpop.f32.mrb[0].mxu0
      %v767 = vadd.f32 0.0, %v766
      %v768 = vpop.f32.mrb[0].mxu0
      %769 = vmatprep.mubr.bf16.mxu0 0
      %770 = vmatmul.mubr.bf16.gmra.mrb[0].mxu0 %v557
      %v771 = vpop.f32.mrb[0].mxu0
      %v772 = vadd.f32 0.0, %v771
      %v773 = vpop.f32.mrb[0].mxu0
      %v774 = vpop.f32.mrb[0].mxu0
      %v775 = vadd.f32 0.0, %v774
      %v776 = vpop.f32.mrb[0].mxu0
      %777 = vmatprep.mubr.bf16.mxu0 0
      %778 = vmatmul.mubr.bf16.gmra.mrb[0].mxu0 %v560
      %v779 = vpop.f32.mrb[0].mxu0
      %v780 = vadd.f32 0.0, %v779
      %v781 = vpop.f32.mrb[0].mxu0
      %v782 = vpop.f32.mrb[0].mxu0
      %v783 = vadd.f32 0.0, %v782
      %v784 = vpop.f32.mrb[0].mxu0
      %785 = vmatprep.mubr.bf16.mxu0 0
      %786 = vmatmul.mubr.bf16.gmra.mrb[0].mxu0 %v563
      %v787 = vpop.f32.mrb[0].mxu0
      %v788 = vadd.f32 0.0, %v787
      %v789 = vpop.f32.mrb[0].mxu0
      %v790 = vpop.f32.mrb[0].mxu0
      %v791 = vadd.f32 0.0, %v790
      %v792 = vpop.f32.mrb[0].mxu0
      %793 = vmatprep.mubr.bf16.mxu0 0
      %794 = vmatmul.mubr.bf16.gmra.mrb[0].mxu0 %v566
      %v795 = vpop.f32.mrb[0].mxu0
      %v796 = vadd.f32 0.0, %v795
      %v797 = vpop.f32.mrb[0].mxu0
      %v798 = vpop.f32.mrb[0].mxu0
      %v799 = vadd.f32 0.0, %v798
      %v800 = vpop.f32.mrb[0].mxu0
      %801 = vmatprep.mubr.bf16.mxu0 0
      %802 = vmatmul.mubr.bf16.gmra.mrb[0].mxu0 %v569
      %v803 = vpop.f32.mrb[0].mxu0
      %v804 = vadd.f32 0.0, %v803
      %v805 = vpop.f32.mrb[0].mxu0
      %v806 = vpop.f32.mrb[0].mxu0
      %v807 = vadd.f32 0.0, %v806
      %v808 = vpop.f32.mrb[0].mxu0
      %809 = vmatprep.mubr.bf16.mxu0 0
      %810 = vmatmul.mubr.bf16.gmra.mrb[0].mxu0 %v572
      %v811 = vpop.f32.mrb[0].mxu0
      %v812 = vadd.f32 0.0, %v811
      %v813 = vpop.f32.mrb[0].mxu0
      %v814 = vpop.f32.mrb[0].mxu0
      %v815 = vadd.f32 0.0, %v814
      %v816 = vpop.f32.mrb[0].mxu0
      %817 = vmatprep.mubr.bf16.mxu0 0
      %818 = vmatmul.mubr.bf16.gmra.mrb[0].mxu0 %v575
      %v819 = vpop.f32.mrb[0].mxu0
      %v820 = vadd.f32 0.0, %v819
      %v821 = vpop.f32.mrb[0].mxu0
      %v822 = vpop.f32.mrb[0].mxu0
      %v823 = vadd.f32 0.0, %v822
      %v824 = vpop.f32.mrb[0].mxu0
      %825 = vmatprep.mubr.bf16.mxu0 0
      %826 = vmatmul.mubr.bf16.gmra.mrb[0].mxu0 %v578
      %v827 = vpop.f32.mrb[0].mxu0
      %v828 = vadd.f32 0.0, %v827
      %v829 = vpop.f32.mrb[0].mxu0
      %v830 = vpop.f32.mrb[0].mxu0
      %v831 = vadd.f32 0.0, %v830
      %v832 = vpop.f32.mrb[0].mxu0
      %833 = vmatprep.mubr.bf16.mxu0 0
      %834 = vmatmul.mubr.bf16.gmra.mrb[0].mxu0 %v581
      %v835 = vpop.f32.mrb[0].mxu0
      %v836 = vadd.f32 0.0, %v835
      %v837 = vpop.f32.mrb[0].mxu0
      %v838 = vpop.f32.mrb[0].mxu0
      %v839 = vadd.f32 0.0, %v838
      %v840 = vpop.f32.mrb[0].mxu0
      %841 = vmatprep.mubr.bf16.mxu0 0
      %842 = vmatmul.mubr.bf16.gmra.mrb[0].mxu0 %v584
      %v843 = vpop.f32.mrb[0].mxu0
      %v844 = vadd.f32 0.0, %v843
      %v845 = vpop.f32.mrb[0].mxu0
      %v846 = vpop.f32.mrb[0].mxu0
      %v847 = vadd.f32 0.0, %v846
      %v848 = vpop.f32.mrb[0].mxu0
      %849 = vmatprep.mubr.bf16.mxu0 0
      %850 = vmatmul.mubr.bf16.gmra.mrb[0].mxu0 %v587
      %v851 = vpop.f32.mrb[0].mxu0
      %v852 = vadd.f32 0.0, %v851
      %v853 = vpop.f32.mrb[0].mxu0
      %v854 = vpop.f32.mrb[0].mxu0
      %v855 = vadd.f32 0.0, %v854
      %v856 = vpop.f32.mrb[0].mxu0
      %857 = vmatprep.mubr.bf16.mxu0 0
      %858 = vmatmul.mubr.bf16.gmra.mrb[0].mxu0 %v590
      %v859 = vpop.f32.mrb[0].mxu0
      %v860 = vadd.f32 0.0, %v859
      %v861 = vpop.f32.mrb[0].mxu0
      %v862 = vpop.f32.mrb[0].mxu0
      %v863 = vadd.f32 0.0, %v862
      %v864 = vpop.f32.mrb[0].mxu0
      %865 = vmatprep.mubr.bf16.mxu0 0
      %866 = vmatmul.mubr.bf16.gmra.mrb[0].mxu0 %v593
      %v867 = vpop.f32.mrb[0].mxu0
      %v868 = vadd.f32 0.0, %v867
      %v869 = vpop.f32.mrb[0].mxu0
      %v870 = vpop.f32.mrb[0].mxu0
      %v871 = vadd.f32 0.0, %v870
      %v872 = vpop.f32.mrb[0].mxu0
      %873 = vmatprep.mubr.bf16.mxu0 0
      %874 = vmatmul.mubr.bf16.gmra.mrb[0].mxu0 %v596
      %v875 = vpop.f32.mrb[0].mxu0
      %v876 = vadd.f32 0.0, %v875
      %v877 = vpop.f32.mrb[0].mxu0
      %v878 = vpop.f32.mrb[0].mxu0
      %v879 = vadd.f32 0.0, %v878
      %v880 = vpop.f32.mrb[0].mxu0
      %881 = vmatprep.mubr.bf16.mxu0 0
      %882 = vmatmul.mubr.bf16.gmra.mrb[0].mxu0 %v599
      %v883 = vpop.f32.mrb[0].mxu0
      %v884 = vadd.f32 0.0, %v883
      %v885 = vpop.f32.mrb[0].mxu0
      %v886 = vpop.f32.mrb[0].mxu0
      %v887 = vadd.f32 0.0, %v886
      %v888 = vpop.f32.mrb[0].mxu0
      %889 = vdwg.mxu0
      %v890 = vld [vmem:[%s1] sm:$0x1]
      %v892 = vlaneseq
      %v893 = vshrl.u32 %v892, 7
      %v894 = vsub.s32 0, %v893
      %v895 = vrot.slane %v890, %v894
      %v897 = vadd.f32 %v636, %v895
      %v898 = vadd.f32 %v639, %v895
      %v899 = vadd.f32 %v644, %v895
      %v900 = vadd.f32 %v647, %v895
      %v901 = vadd.f32 %v652, %v895
      %v902 = vadd.f32 %v655, %v895
      %v903 = vadd.f32 %v660, %v895
      %v904 = vadd.f32 %v663, %v895
      %v905 = vadd.f32 %v668, %v895
      %v906 = vadd.f32 %v671, %v895
      %v907 = vadd.f32 %v676, %v895
      %v908 = vadd.f32 %v679, %v895
      %v909 = vadd.f32 %v684, %v895
      %v910 = vadd.f32 %v687, %v895
      %v911 = vadd.f32 %v692, %v895
      %v912 = vadd.f32 %v695, %v895
      %v913 = vadd.f32 %v700, %v895
      %v914 = vadd.f32 %v703, %v895
      %v915 = vadd.f32 %v708, %v895
      %v916 = vadd.f32 %v711, %v895
      %v917 = vadd.f32 %v716, %v895
      %v918 = vadd.f32 %v719, %v895
      %v919 = vadd.f32 %v724, %v895
      %v920 = vadd.f32 %v727, %v895
      %v921 = vadd.f32 %v732, %v895
      %v922 = vadd.f32 %v735, %v895
      %v923 = vadd.f32 %v740, %v895
      %v924 = vadd.f32 %v743, %v895
      %v925 = vadd.f32 %v748, %v895
      %v926 = vadd.f32 %v751, %v895
      %v927 = vadd.f32 %v756, %v895
      %v928 = vadd.f32 %v759, %v895
      %v929 = vadd.f32 %v764, %v895
      %v930 = vadd.f32 %v767, %v895
      %v931 = vadd.f32 %v772, %v895
      %v932 = vadd.f32 %v775, %v895
      %v933 = vadd.f32 %v780, %v895
      %v934 = vadd.f32 %v783, %v895
      %v935 = vadd.f32 %v788, %v895
      %v936 = vadd.f32 %v791, %v895
      %v937 = vadd.f32 %v796, %v895
      %v938 = vadd.f32 %v799, %v895
      %v939 = vadd.f32 %v804, %v895
      %v940 = vadd.f32 %v807, %v895
      %v941 = vadd.f32 %v812, %v895
      %v942 = vadd.f32 %v815, %v895
      %v943 = vadd.f32 %v820, %v895
      %v944 = vadd.f32 %v823, %v895
      %v945 = vadd.f32 %v828, %v895
      %v946 = vadd.f32 %v831, %v895
      %v947 = vadd.f32 %v836, %v895
      %v948 = vadd.f32 %v839, %v895
      %v949 = vadd.f32 %v844, %v895
      %v950 = vadd.f32 %v847, %v895
      %v951 = vadd.f32 %v852, %v895
      %v952 = vadd.f32 %v855, %v895
      %v953 = vadd.f32 %v860, %v895
      %v954 = vadd.f32 %v863, %v895
      %v955 = vadd.f32 %v868, %v895
      %v956 = vadd.f32 %v871, %v895
      %v957 = vadd.f32 %v876, %v895
      %v958 = vadd.f32 %v879, %v895
      %v959 = vadd.f32 %v884, %v895
      %v960 = vadd.f32 %v887, %v895
      %v961 = vmax.f32 %v897, 0.0
      %v962 = vmax.f32 %v898, 0.0
      %v963 = vmax.f32 %v899, 0.0
      %v964 = vmax.f32 %v900, 0.0
      %v965 = vmax.f32 %v901, 0.0
      %v966 = vmax.f32 %v902, 0.0
      %v967 = vmax.f32 %v903, 0.0
      %v968 = vmax.f32 %v904, 0.0
      %v969 = vmax.f32 %v905, 0.0
      %v970 = vmax.f32 %v906, 0.0
      %v971 = vmax.f32 %v907, 0.0
      %v972 = vmax.f32 %v908, 0.0
      %v973 = vmax.f32 %v909, 0.0
      %v974 = vmax.f32 %v910, 0.0
      %v975 = vmax.f32 %v911, 0.0
      %v976 = vmax.f32 %v912, 0.0
      %v977 = vmax.f32 %v913, 0.0
      %v978 = vmax.f32 %v914, 0.0
      %v979 = vmax.f32 %v915, 0.0
      %v980 = vmax.f32 %v916, 0.0
      %v981 = vmax.f32 %v917, 0.0
      %v982 = vmax.f32 %v918, 0.0
      %v983 = vmax.f32 %v919, 0.0
      %v984 = vmax.f32 %v920, 0.0
      %v985 = vmax.f32 %v921, 0.0
      %v986 = vmax.f32 %v922, 0.0
      %v987 = vmax.f32 %v923, 0.0
      %v988 = vmax.f32 %v924, 0.0
      %v989 = vmax.f32 %v925, 0.0
      %v990 = vmax.f32 %v926, 0.0
      %v991 = vmax.f32 %v927, 0.0
      %v992 = vmax.f32 %v928, 0.0
      %v993 = vmax.f32 %v929, 0.0
      %v994 = vmax.f32 %v930, 0.0
      %v995 = vmax.f32 %v931, 0.0
      %v996 = vmax.f32 %v932, 0.0
      %v997 = vmax.f32 %v933, 0.0
      %v998 = vmax.f32 %v934, 0.0
      %v999 = vmax.f32 %v935, 0.0
      %v1000 = vmax.f32 %v936, 0.0
      %v1001 = vmax.f32 %v937, 0.0
      %v1002 = vmax.f32 %v938, 0.0
      %v1003 = vmax.f32 %v939, 0.0
      %v1004 = vmax.f32 %v940, 0.0
      %v1005 = vmax.f32 %v941, 0.0
      %v1006 = vmax.f32 %v942, 0.0
      %v1007 = vmax.f32 %v943, 0.0
      %v1008 = vmax.f32 %v944, 0.0
      %v1009 = vmax.f32 %v945, 0.0
      %v1010 = vmax.f32 %v946, 0.0
      %v1011 = vmax.f32 %v947, 0.0
      %v1012 = vmax.f32 %v948, 0.0
      %v1013 = vmax.f32 %v949, 0.0
      %v1014 = vmax.f32 %v950, 0.0
      %v1015 = vmax.f32 %v951, 0.0
      %v1016 = vmax.f32 %v952, 0.0
      %v1017 = vmax.f32 %v953, 0.0
      %v1018 = vmax.f32 %v954, 0.0
      %v1019 = vmax.f32 %v955, 0.0
      %v1020 = vmax.f32 %v956, 0.0
      %v1021 = vmax.f32 %v957, 0.0
      %v1022 = vmax.f32 %v958, 0.0
      %v1023 = vmax.f32 %v959, 0.0
      %v1024 = vmax.f32 %v960, 0.0
      %v1025 = vpack.c.bf16 %v962, %v961
      %v1026 = vpack.c.bf16 %v964, %v963
      %v1027 = vpack.c.bf16 %v966, %v965
      %v1028 = vpack.c.bf16 %v968, %v967
      %v1029 = vpack.c.bf16 %v970, %v969
      %v1030 = vpack.c.bf16 %v972, %v971
      %v1031 = vpack.c.bf16 %v974, %v973
      %v1032 = vpack.c.bf16 %v976, %v975
      %v1033 = vpack.c.bf16 %v978, %v977
      %v1034 = vpack.c.bf16 %v980, %v979
      %v1035 = vpack.c.bf16 %v982, %v981
      %v1036 = vpack.c.bf16 %v984, %v983
      %v1037 = vpack.c.bf16 %v986, %v985
      %v1038 = vpack.c.bf16 %v988, %v987
      %v1039 = vpack.c.bf16 %v990, %v989
      %v1040 = vpack.c.bf16 %v992, %v991
      %v1041 = vpack.c.bf16 %v994, %v993
      %v1042 = vpack.c.bf16 %v996, %v995
      %v1043 = vpack.c.bf16 %v998, %v997
      %v1044 = vpack.c.bf16 %v1000, %v999
      %v1045 = vpack.c.bf16 %v1002, %v1001
      %v1046 = vpack.c.bf16 %v1004, %v1003
      %v1047 = vpack.c.bf16 %v1006, %v1005
      %v1048 = vpack.c.bf16 %v1008, %v1007
      %v1049 = vpack.c.bf16 %v1010, %v1009
      %v1050 = vpack.c.bf16 %v1012, %v1011
      %v1051 = vpack.c.bf16 %v1014, %v1013
      %v1052 = vpack.c.bf16 %v1016, %v1015
      %v1053 = vpack.c.bf16 %v1018, %v1017
      %v1054 = vpack.c.bf16 %v1020, %v1019
      %v1055 = vpack.c.bf16 %v1022, %v1021
      %v1056 = vpack.c.bf16 %v1024, %v1023
      %v1057 = vld [vmem:[%s3] sm:$0xf]
      %v1058 = vld [vmem:[%s3 + $0x4] sm:$0xf]
      %v1059 = vld [vmem:[%s3 + $0x8] sm:$0xf]
      %v1060 = vld [vmem:[%s3 + $0xc] sm:$0xf]
      %v1061 = vld [vmem:[%s3 + $0x10] sm:$0xf]
      %v1062 = vld [vmem:[%s3 + $0x14] sm:$0xf]
      %v1063 = vld [vmem:[%s3 + $0x18] sm:$0xf]
      %v1064 = vld [vmem:[%s3 + $0x1c] sm:$0xf]
      %v1073 = vunpack.c.l.b16 %v1057
      %v1074 = vunpack.c.l.b16 %v1058
      %v1075 = vunpack.c.l.b16 %v1059
      %v1076 = vunpack.c.l.b16 %v1060
      %v1077 = vunpack.c.l.b16 %v1061
      %v1078 = vunpack.c.l.b16 %v1062
      %v1079 = vunpack.c.l.b16 %v1063
      %v1080 = vunpack.c.l.b16 %v1064
      %v1081 = vpack.c.b16 %v1074, %v1073
      %v1082 = vpack.c.b16 %v1076, %v1075
      %v1083 = vpack.c.b16 %v1078, %v1077
      %v1084 = vpack.c.b16 %v1080, %v1079
      %vm1089 = vcmask 523264
      %v1091 = vsel %vm1089, %v1025, 0
      %v1094 = vsel %vm1089, %v1026, 0
      %v1097 = vsel %vm1089, %v1027, 0
      %v1100 = vsel %vm1089, %v1028, 0
      %v1103 = vsel %vm1089, %v1029, 0
      %v1106 = vsel %vm1089, %v1030, 0
      %v1109 = vsel %vm1089, %v1031, 0
      %v1112 = vsel %vm1089, %v1032, 0
      %v1115 = vsel %vm1089, %v1033, 0
      %v1118 = vsel %vm1089, %v1034, 0
      %v1121 = vsel %vm1089, %v1035, 0
      %v1124 = vsel %vm1089, %v1036, 0
      %v1127 = vsel %vm1089, %v1037, 0
      %v1130 = vsel %vm1089, %v1038, 0
      %v1133 = vsel %vm1089, %v1039, 0
      %v1136 = vsel %vm1089, %v1040, 0
      %v1139 = vsel %vm1089, %v1041, 0
      %v1142 = vsel %vm1089, %v1042, 0
      %v1145 = vsel %vm1089, %v1043, 0
      %v1148 = vsel %vm1089, %v1044, 0
      %v1151 = vsel %vm1089, %v1045, 0
      %v1154 = vsel %vm1089, %v1046, 0
      %v1157 = vsel %vm1089, %v1047, 0
      %v1160 = vsel %vm1089, %v1048, 0
      %v1163 = vsel %vm1089, %v1049, 0
      %v1166 = vsel %vm1089, %v1050, 0
      %v1169 = vsel %vm1089, %v1051, 0
      %v1172 = vsel %vm1089, %v1052, 0
      %v1175 = vsel %vm1089, %v1053, 0
      %v1178 = vsel %vm1089, %v1054, 0
      %v1181 = vsel %vm1089, %v1055, 0
      %v1184 = vsel %vm1089, %v1056, 0
      %1186 = vmatprep.subr.bf16.mxu0 0
      %1187 = vmatpush1.bf16.msra.mxu0 %v1081
      %1188 = vmatprep.subr.bf16.mxu0 0
      %1189 = vmatpush1.bf16.msra.mxu0 %v1082
      %1190 = vmatprep.subr.bf16.mxu0 0
      %1191 = vmatpush1.bf16.msra.mxu0 %v1083
      %1192 = vmatprep.subr.bf16.mxu0 0
      %1193 = vmatpush1.bf16.msra.mxu0 %v1084
      %1194 = vmatprep.subr.bf16.mxu0 0
      %1195 = vmatpush1.bf16.msra.mxu0 0
      %1196 = vmatprep.subr.bf16.mxu0 0
      %1197 = vmatpush1.bf16.msra.mxu0 0
      %1198 = vmatprep.subr.bf16.mxu0 0
      %1199 = vmatpush1.bf16.msra.mxu0 0
      %1200 = vmatprep.subr.bf16.mxu0 0
      %1201 = vmatpush1.bf16.msra.mxu0 0
      %1202 = vmatprep.subr.bf16.mxu0 0
      %1203 = vmatpush1.bf16.msra.mxu0 0
      %1204 = vmatprep.subr.bf16.mxu0 0
      %1205 = vmatpush1.bf16.msra.mxu0 0
      %1206 = vmatprep.subr.bf16.mxu0 0
      %1207 = vmatpush1.bf16.msra.mxu0 0
      %1208 = vmatprep.subr.bf16.mxu0 0
      %1209 = vmatpush1.bf16.msra.mxu0 0
      %1210 = vmatprep.subr.bf16.mxu0 0
      %1211 = vmatpush1.bf16.msra.mxu0 0
      %1212 = vmatprep.subr.bf16.mxu0 0
      %1213 = vmatpush1.bf16.msra.mxu0 0
      %1214 = vmatprep.subr.bf16.mxu0 0
      %1215 = vmatpush1.bf16.msra.mxu0 0
      %1216 = vmatprep.subr.bf16.mxu0 0
      %1217 = vmatpush1.bf16.msra.mxu0 0
      %1218 = vmatprep.mubr.bf16.mxu0 0
      %1219 = vmatmul.mubr.bf16.gmra.mrb[0].mxu0 %v1091
      %v1220 = vpop.f32.mrb[0].mxu0
      %v1221 = vadd.f32 0.0, %v1220
      %v1222 = vpop.f32.mrb[0].mxu0
      %v1223 = vpop.f32.mrb[0].mxu0
      %v1224 = vadd.f32 0.0, %v1223
      %v1225 = vpop.f32.mrb[0].mxu0
      %1226 = vmatprep.mubr.bf16.mxu0 0
      %1227 = vmatmul.mubr.bf16.gmra.mrb[0].mxu0 %v1094
      %v1228 = vpop.f32.mrb[0].mxu0
      %v1229 = vadd.f32 0.0, %v1228
      %v1230 = vpop.f32.mrb[0].mxu0
      %v1231 = vpop.f32.mrb[0].mxu0
      %v1232 = vadd.f32 0.0, %v1231
      %v1233 = vpop.f32.mrb[0].mxu0
      %1234 = vmatprep.mubr.bf16.mxu0 0
      %1235 = vmatmul.mubr.bf16.gmra.mrb[0].mxu0 %v1097
      %v1236 = vpop.f32.mrb[0].mxu0
      %v1237 = vadd.f32 0.0, %v1236
      %v1238 = vpop.f32.mrb[0].mxu0
      %v1239 = vpop.f32.mrb[0].mxu0
      %v1240 = vadd.f32 0.0, %v1239
      %v1241 = vpop.f32.mrb[0].mxu0
      %1242 = vmatprep.mubr.bf16.mxu0 0
      %1243 = vmatmul.mubr.bf16.gmra.mrb[0].mxu0 %v1100
      %v1244 = vpop.f32.mrb[0].mxu0
      %v1245 = vadd.f32 0.0, %v1244
      %v1246 = vpop.f32.mrb[0].mxu0
      %v1247 = vpop.f32.mrb[0].mxu0
      %v1248 = vadd.f32 0.0, %v1247
      %v1249 = vpop.f32.mrb[0].mxu0
      %1250 = vmatprep.mubr.bf16.mxu0 0
      %1251 = vmatmul.mubr.bf16.gmra.mrb[0].mxu0 %v1103
      %v1252 = vpop.f32.mrb[0].mxu0
      %v1253 = vadd.f32 0.0, %v1252
      %v1254 = vpop.f32.mrb[0].mxu0
      %v1255 = vpop.f32.mrb[0].mxu0
      %v1256 = vadd.f32 0.0, %v1255
      %v1257 = vpop.f32.mrb[0].mxu0
      %1258 = vmatprep.mubr.bf16.mxu0 0
      %1259 = vmatmul.mubr.bf16.gmra.mrb[0].mxu0 %v1106
      %v1260 = vpop.f32.mrb[0].mxu0
      %v1261 = vadd.f32 0.0, %v1260
      %v1262 = vpop.f32.mrb[0].mxu0
      %v1263 = vpop.f32.mrb[0].mxu0
      %v1264 = vadd.f32 0.0, %v1263
      %v1265 = vpop.f32.mrb[0].mxu0
      %1266 = vmatprep.mubr.bf16.mxu0 0
      %1267 = vmatmul.mubr.bf16.gmra.mrb[0].mxu0 %v1109
      %v1268 = vpop.f32.mrb[0].mxu0
      %v1269 = vadd.f32 0.0, %v1268
      %v1270 = vpop.f32.mrb[0].mxu0
      %v1271 = vpop.f32.mrb[0].mxu0
      %v1272 = vadd.f32 0.0, %v1271
      %v1273 = vpop.f32.mrb[0].mxu0
      %1274 = vmatprep.mubr.bf16.mxu0 0
      %1275 = vmatmul.mubr.bf16.gmra.mrb[0].mxu0 %v1112
      %v1276 = vpop.f32.mrb[0].mxu0
      %v1277 = vadd.f32 0.0, %v1276
      %v1278 = vpop.f32.mrb[0].mxu0
      %v1279 = vpop.f32.mrb[0].mxu0
      %v1280 = vadd.f32 0.0, %v1279
      %v1281 = vpop.f32.mrb[0].mxu0
      %1282 = vmatprep.mubr.bf16.mxu0 0
      %1283 = vmatmul.mubr.bf16.gmra.mrb[0].mxu0 %v1115
      %v1284 = vpop.f32.mrb[0].mxu0
      %v1285 = vadd.f32 0.0, %v1284
      %v1286 = vpop.f32.mrb[0].mxu0
      %v1287 = vpop.f32.mrb[0].mxu0
      %v1288 = vadd.f32 0.0, %v1287
      %v1289 = vpop.f32.mrb[0].mxu0
      %1290 = vmatprep.mubr.bf16.mxu0 0
      %1291 = vmatmul.mubr.bf16.gmra.mrb[0].mxu0 %v1118
      %v1292 = vpop.f32.mrb[0].mxu0
      %v1293 = vadd.f32 0.0, %v1292
      %v1294 = vpop.f32.mrb[0].mxu0
      %v1295 = vpop.f32.mrb[0].mxu0
      %v1296 = vadd.f32 0.0, %v1295
      %v1297 = vpop.f32.mrb[0].mxu0
      %1298 = vmatprep.mubr.bf16.mxu0 0
      %1299 = vmatmul.mubr.bf16.gmra.mrb[0].mxu0 %v1121
      %v1300 = vpop.f32.mrb[0].mxu0
      %v1301 = vadd.f32 0.0, %v1300
      %v1302 = vpop.f32.mrb[0].mxu0
      %v1303 = vpop.f32.mrb[0].mxu0
      %v1304 = vadd.f32 0.0, %v1303
      %v1305 = vpop.f32.mrb[0].mxu0
      %1306 = vmatprep.mubr.bf16.mxu0 0
      %1307 = vmatmul.mubr.bf16.gmra.mrb[0].mxu0 %v1124
      %v1308 = vpop.f32.mrb[0].mxu0
      %v1309 = vadd.f32 0.0, %v1308
      %v1310 = vpop.f32.mrb[0].mxu0
      %v1311 = vpop.f32.mrb[0].mxu0
      %v1312 = vadd.f32 0.0, %v1311
      %v1313 = vpop.f32.mrb[0].mxu0
      %1314 = vmatprep.mubr.bf16.mxu0 0
      %1315 = vmatmul.mubr.bf16.gmra.mrb[0].mxu0 %v1127
      %v1316 = vpop.f32.mrb[0].mxu0
      %v1317 = vadd.f32 0.0, %v1316
      %v1318 = vpop.f32.mrb[0].mxu0
      %v1319 = vpop.f32.mrb[0].mxu0
      %v1320 = vadd.f32 0.0, %v1319
      %v1321 = vpop.f32.mrb[0].mxu0
      %1322 = vmatprep.mubr.bf16.mxu0 0
      %1323 = vmatmul.mubr.bf16.gmra.mrb[0].mxu0 %v1130
      %v1324 = vpop.f32.mrb[0].mxu0
      %v1325 = vadd.f32 0.0, %v1324
      %v1326 = vpop.f32.mrb[0].mxu0
      %v1327 = vpop.f32.mrb[0].mxu0
      %v1328 = vadd.f32 0.0, %v1327
      %v1329 = vpop.f32.mrb[0].mxu0
      %1330 = vmatprep.mubr.bf16.mxu0 0
      %1331 = vmatmul.mubr.bf16.gmra.mrb[0].mxu0 %v1133
      %v1332 = vpop.f32.mrb[0].mxu0
      %v1333 = vadd.f32 0.0, %v1332
      %v1334 = vpop.f32.mrb[0].mxu0
      %v1335 = vpop.f32.mrb[0].mxu0
      %v1336 = vadd.f32 0.0, %v1335
      %v1337 = vpop.f32.mrb[0].mxu0
      %1338 = vmatprep.mubr.bf16.mxu0 0
      %1339 = vmatmul.mubr.bf16.gmra.mrb[0].mxu0 %v1136
      %v1340 = vpop.f32.mrb[0].mxu0
      %v1341 = vadd.f32 0.0, %v1340
      %v1342 = vpop.f32.mrb[0].mxu0
      %v1343 = vpop.f32.mrb[0].mxu0
      %v1344 = vadd.f32 0.0, %v1343
      %v1345 = vpop.f32.mrb[0].mxu0
      %1346 = vmatprep.mubr.bf16.mxu0 0
      %1347 = vmatmul.mubr.bf16.gmra.mrb[0].mxu0 %v1139
      %v1348 = vpop.f32.mrb[0].mxu0
      %v1349 = vadd.f32 0.0, %v1348
      %v1350 = vpop.f32.mrb[0].mxu0
      %v1351 = vpop.f32.mrb[0].mxu0
      %v1352 = vadd.f32 0.0, %v1351
      %v1353 = vpop.f32.mrb[0].mxu0
      %1354 = vmatprep.mubr.bf16.mxu0 0
      %1355 = vmatmul.mubr.bf16.gmra.mrb[0].mxu0 %v1142
      %v1356 = vpop.f32.mrb[0].mxu0
      %v1357 = vadd.f32 0.0, %v1356
      %v1358 = vpop.f32.mrb[0].mxu0
      %v1359 = vpop.f32.mrb[0].mxu0
      %v1360 = vadd.f32 0.0, %v1359
      %v1361 = vpop.f32.mrb[0].mxu0
      %1362 = vmatprep.mubr.bf16.mxu0 0
      %1363 = vmatmul.mubr.bf16.gmra.mrb[0].mxu0 %v1145
      %v1364 = vpop.f32.mrb[0].mxu0
      %v1365 = vadd.f32 0.0, %v1364
      %v1366 = vpop.f32.mrb[0].mxu0
      %v1367 = vpop.f32.mrb[0].mxu0
      %v1368 = vadd.f32 0.0, %v1367
      %v1369 = vpop.f32.mrb[0].mxu0
      %1370 = vmatprep.mubr.bf16.mxu0 0
      %1371 = vmatmul.mubr.bf16.gmra.mrb[0].mxu0 %v1148
      %v1372 = vpop.f32.mrb[0].mxu0
      %v1373 = vadd.f32 0.0, %v1372
      %v1374 = vpop.f32.mrb[0].mxu0
      %v1375 = vpop.f32.mrb[0].mxu0
      %v1376 = vadd.f32 0.0, %v1375
      %v1377 = vpop.f32.mrb[0].mxu0
      %1378 = vmatprep.mubr.bf16.mxu0 0
      %1379 = vmatmul.mubr.bf16.gmra.mrb[0].mxu0 %v1151
      %v1380 = vpop.f32.mrb[0].mxu0
      %v1381 = vadd.f32 0.0, %v1380
      %v1382 = vpop.f32.mrb[0].mxu0
      %v1383 = vpop.f32.mrb[0].mxu0
      %v1384 = vadd.f32 0.0, %v1383
      %v1385 = vpop.f32.mrb[0].mxu0
      %1386 = vmatprep.mubr.bf16.mxu0 0
      %1387 = vmatmul.mubr.bf16.gmra.mrb[0].mxu0 %v1154
      %v1388 = vpop.f32.mrb[0].mxu0
      %v1389 = vadd.f32 0.0, %v1388
      %v1390 = vpop.f32.mrb[0].mxu0
      %v1391 = vpop.f32.mrb[0].mxu0
      %v1392 = vadd.f32 0.0, %v1391
      %v1393 = vpop.f32.mrb[0].mxu0
      %1394 = vmatprep.mubr.bf16.mxu0 0
      %1395 = vmatmul.mubr.bf16.gmra.mrb[0].mxu0 %v1157
      %v1396 = vpop.f32.mrb[0].mxu0
      %v1397 = vadd.f32 0.0, %v1396
      %v1398 = vpop.f32.mrb[0].mxu0
      %v1399 = vpop.f32.mrb[0].mxu0
      %v1400 = vadd.f32 0.0, %v1399
      %v1401 = vpop.f32.mrb[0].mxu0
      %1402 = vmatprep.mubr.bf16.mxu0 0
      %1403 = vmatmul.mubr.bf16.gmra.mrb[0].mxu0 %v1160
      %v1404 = vpop.f32.mrb[0].mxu0
      %v1405 = vadd.f32 0.0, %v1404
      %v1406 = vpop.f32.mrb[0].mxu0
      %v1407 = vpop.f32.mrb[0].mxu0
      %v1408 = vadd.f32 0.0, %v1407
      %v1409 = vpop.f32.mrb[0].mxu0
      %1410 = vmatprep.mubr.bf16.mxu0 0
      %1411 = vmatmul.mubr.bf16.gmra.mrb[0].mxu0 %v1163
      %v1412 = vpop.f32.mrb[0].mxu0
      %v1413 = vadd.f32 0.0, %v1412
      %v1414 = vpop.f32.mrb[0].mxu0
      %v1415 = vpop.f32.mrb[0].mxu0
      %v1416 = vadd.f32 0.0, %v1415
      %v1417 = vpop.f32.mrb[0].mxu0
      %1418 = vmatprep.mubr.bf16.mxu0 0
      %1419 = vmatmul.mubr.bf16.gmra.mrb[0].mxu0 %v1166
      %v1420 = vpop.f32.mrb[0].mxu0
      %v1421 = vadd.f32 0.0, %v1420
      %v1422 = vpop.f32.mrb[0].mxu0
      %v1423 = vpop.f32.mrb[0].mxu0
      %v1424 = vadd.f32 0.0, %v1423
      %v1425 = vpop.f32.mrb[0].mxu0
      %1426 = vmatprep.mubr.bf16.mxu0 0
      %1427 = vmatmul.mubr.bf16.gmra.mrb[0].mxu0 %v1169
      %v1428 = vpop.f32.mrb[0].mxu0
      %v1429 = vadd.f32 0.0, %v1428
      %v1430 = vpop.f32.mrb[0].mxu0
      %v1431 = vpop.f32.mrb[0].mxu0
      %v1432 = vadd.f32 0.0, %v1431
      %v1433 = vpop.f32.mrb[0].mxu0
      %1434 = vmatprep.mubr.bf16.mxu0 0
      %1435 = vmatmul.mubr.bf16.gmra.mrb[0].mxu0 %v1172
      %v1436 = vpop.f32.mrb[0].mxu0
      %v1437 = vadd.f32 0.0, %v1436
      %v1438 = vpop.f32.mrb[0].mxu0
      %v1439 = vpop.f32.mrb[0].mxu0
      %v1440 = vadd.f32 0.0, %v1439
      %v1441 = vpop.f32.mrb[0].mxu0
      %1442 = vmatprep.mubr.bf16.mxu0 0
      %1443 = vmatmul.mubr.bf16.gmra.mrb[0].mxu0 %v1175
      %v1444 = vpop.f32.mrb[0].mxu0
      %v1445 = vadd.f32 0.0, %v1444
      %v1446 = vpop.f32.mrb[0].mxu0
      %v1447 = vpop.f32.mrb[0].mxu0
      %v1448 = vadd.f32 0.0, %v1447
      %v1449 = vpop.f32.mrb[0].mxu0
      %1450 = vmatprep.mubr.bf16.mxu0 0
      %1451 = vmatmul.mubr.bf16.gmra.mrb[0].mxu0 %v1178
      %v1452 = vpop.f32.mrb[0].mxu0
      %v1453 = vadd.f32 0.0, %v1452
      %v1454 = vpop.f32.mrb[0].mxu0
      %v1455 = vpop.f32.mrb[0].mxu0
      %v1456 = vadd.f32 0.0, %v1455
      %v1457 = vpop.f32.mrb[0].mxu0
      %1458 = vmatprep.mubr.bf16.mxu0 0
      %1459 = vmatmul.mubr.bf16.gmra.mrb[0].mxu0 %v1181
      %v1460 = vpop.f32.mrb[0].mxu0
      %v1461 = vadd.f32 0.0, %v1460
      %v1462 = vpop.f32.mrb[0].mxu0
      %v1463 = vpop.f32.mrb[0].mxu0
      %v1464 = vadd.f32 0.0, %v1463
      %v1465 = vpop.f32.mrb[0].mxu0
      %1466 = vmatprep.mubr.bf16.mxu0 0
      %1467 = vmatmul.mubr.bf16.gmra.mrb[0].mxu0 %v1184
      %v1468 = vpop.f32.mrb[0].mxu0
      %v1469 = vadd.f32 0.0, %v1468
      %v1470 = vpop.f32.mrb[0].mxu0
      %v1471 = vpop.f32.mrb[0].mxu0
      %v1472 = vadd.f32 0.0, %v1471
      %v1473 = vpop.f32.mrb[0].mxu0
      %1474 = vdwg.mxu0
      %v1475 = vmul.f32 %v1221, 1.442695
      %v1476 = vpow.pop %v1475
      %v1477 = vmul.f32 %v1224, 1.442695
      %v1478 = vpow.pop %v1477
      %v1479 = vmul.f32 %v1229, 1.442695
      %v1480 = vpow.pop %v1479
      %v1481 = vmul.f32 %v1232, 1.442695
      %v1482 = vpow.pop %v1481
      %v1483 = vmul.f32 %v1237, 1.442695
      %v1484 = vpow.pop %v1483
      %v1485 = vmul.f32 %v1240, 1.442695
      %v1486 = vpow.pop %v1485
      %v1487 = vmul.f32 %v1245, 1.442695
      %v1488 = vpow.pop %v1487
      %v1489 = vmul.f32 %v1248, 1.442695
      %v1490 = vpow.pop %v1489
      %v1491 = vmul.f32 %v1253, 1.442695
      %v1492 = vpow.pop %v1491
      %v1493 = vmul.f32 %v1256, 1.442695
      %v1494 = vpow.pop %v1493
      %v1495 = vmul.f32 %v1261, 1.442695
      %v1496 = vpow.pop %v1495
      %v1497 = vmul.f32 %v1264, 1.442695
      %v1498 = vpow.pop %v1497
      %v1499 = vmul.f32 %v1269, 1.442695
      %v1500 = vpow.pop %v1499
      %v1501 = vmul.f32 %v1272, 1.442695
      %v1502 = vpow.pop %v1501
      %v1503 = vmul.f32 %v1277, 1.442695
      %v1504 = vpow.pop %v1503
      %v1505 = vmul.f32 %v1280, 1.442695
      %v1506 = vpow.pop %v1505
      %v1507 = vmul.f32 %v1285, 1.442695
      %v1508 = vpow.pop %v1507
      %v1509 = vmul.f32 %v1288, 1.442695
      %v1510 = vpow.pop %v1509
      %v1511 = vmul.f32 %v1293, 1.442695
      %v1512 = vpow.pop %v1511
      %v1513 = vmul.f32 %v1296, 1.442695
      %v1514 = vpow.pop %v1513
      %v1515 = vmul.f32 %v1301, 1.442695
      %v1516 = vpow.pop %v1515
      %v1517 = vmul.f32 %v1304, 1.442695
      %v1518 = vpow.pop %v1517
      %v1519 = vmul.f32 %v1309, 1.442695
      %v1520 = vpow.pop %v1519
      %v1521 = vmul.f32 %v1312, 1.442695
      %v1522 = vpow.pop %v1521
      %v1523 = vmul.f32 %v1317, 1.442695
      %v1524 = vpow.pop %v1523
      %v1525 = vmul.f32 %v1320, 1.442695
      %v1526 = vpow.pop %v1525
      %v1527 = vmul.f32 %v1325, 1.442695
      %v1528 = vpow.pop %v1527
      %v1529 = vmul.f32 %v1328, 1.442695
      %v1530 = vpow.pop %v1529
      %v1531 = vmul.f32 %v1333, 1.442695
      %v1532 = vpow.pop %v1531
      %v1533 = vmul.f32 %v1336, 1.442695
      %v1534 = vpow.pop %v1533
      %v1535 = vmul.f32 %v1341, 1.442695
      %v1536 = vpow.pop %v1535
      %v1537 = vmul.f32 %v1344, 1.442695
      %v1538 = vpow.pop %v1537
      %v1539 = vmul.f32 %v1349, 1.442695
      %v1540 = vpow.pop %v1539
      %v1541 = vmul.f32 %v1352, 1.442695
      %v1542 = vpow.pop %v1541
      %v1543 = vmul.f32 %v1357, 1.442695
      %v1544 = vpow.pop %v1543
      %v1545 = vmul.f32 %v1360, 1.442695
      %v1546 = vpow.pop %v1545
      %v1547 = vmul.f32 %v1365, 1.442695
      %v1548 = vpow.pop %v1547
      %v1549 = vmul.f32 %v1368, 1.442695
      %v1550 = vpow.pop %v1549
      %v1551 = vmul.f32 %v1373, 1.442695
      %v1552 = vpow.pop %v1551
      %v1553 = vmul.f32 %v1376, 1.442695
      %v1554 = vpow.pop %v1553
      %v1555 = vmul.f32 %v1381, 1.442695
      %v1556 = vpow.pop %v1555
      %v1557 = vmul.f32 %v1384, 1.442695
      %v1558 = vpow.pop %v1557
      %v1559 = vmul.f32 %v1389, 1.442695
      %v1560 = vpow.pop %v1559
      %v1561 = vmul.f32 %v1392, 1.442695
      %v1562 = vpow.pop %v1561
      %v1563 = vmul.f32 %v1397, 1.442695
      %v1564 = vpow.pop %v1563
      %v1565 = vmul.f32 %v1400, 1.442695
      %v1566 = vpow.pop %v1565
      %v1567 = vmul.f32 %v1405, 1.442695
      %v1568 = vpow.pop %v1567
      %v1569 = vmul.f32 %v1408, 1.442695
      %v1570 = vpow.pop %v1569
      %v1571 = vmul.f32 %v1413, 1.442695
      %v1572 = vpow.pop %v1571
      %v1573 = vmul.f32 %v1416, 1.442695
      %v1574 = vpow.pop %v1573
      %v1575 = vmul.f32 %v1421, 1.442695
      %v1576 = vpow.pop %v1575
      %v1577 = vmul.f32 %v1424, 1.442695
      %v1578 = vpow.pop %v1577
      %v1579 = vmul.f32 %v1429, 1.442695
      %v1580 = vpow.pop %v1579
      %v1581 = vmul.f32 %v1432, 1.442695
      %v1582 = vpow.pop %v1581
      %v1583 = vmul.f32 %v1437, 1.442695
      %v1584 = vpow.pop %v1583
      %v1585 = vmul.f32 %v1440, 1.442695
      %v1586 = vpow.pop %v1585
      %v1587 = vmul.f32 %v1445, 1.442695
      %v1588 = vpow.pop %v1587
      %v1589 = vmul.f32 %v1448, 1.442695
      %v1590 = vpow.pop %v1589
      %v1591 = vmul.f32 %v1453, 1.442695
      %v1592 = vpow.pop %v1591
      %v1593 = vmul.f32 %v1456, 1.442695
      %v1594 = vpow.pop %v1593
      %v1595 = vmul.f32 %v1461, 1.442695
      %v1596 = vpow.pop %v1595
      %v1597 = vmul.f32 %v1464, 1.442695
      %v1598 = vpow.pop %v1597
      %v1599 = vmul.f32 %v1469, 1.442695
      %v1600 = vpow.pop %v1599
      %v1601 = vmul.f32 %v1472, 1.442695
      %v1602 = vpow.pop %v1601
      %v1603 = vadd.f32 %v636, %v1221
      %v1604 = vadd.f32 %v639, %v1224
      %v1605 = vadd.f32 %v644, %v1229
      %v1606 = vadd.f32 %v647, %v1232
      %v1607 = vadd.f32 %v652, %v1237
      %v1608 = vadd.f32 %v655, %v1240
      %v1609 = vadd.f32 %v660, %v1245
      %v1610 = vadd.f32 %v663, %v1248
      %v1611 = vadd.f32 %v668, %v1253
      %v1612 = vadd.f32 %v671, %v1256
      %v1613 = vadd.f32 %v676, %v1261
      %v1614 = vadd.f32 %v679, %v1264
      %v1615 = vadd.f32 %v684, %v1269
      %v1616 = vadd.f32 %v687, %v1272
      %v1617 = vadd.f32 %v692, %v1277
      %v1618 = vadd.f32 %v695, %v1280
      %v1619 = vadd.f32 %v700, %v1285
      %v1620 = vadd.f32 %v703, %v1288
      %v1621 = vadd.f32 %v708, %v1293
      %v1622 = vadd.f32 %v711, %v1296
      %v1623 = vadd.f32 %v716, %v1301
      %v1624 = vadd.f32 %v719, %v1304
      %v1625 = vadd.f32 %v724, %v1309
      %v1626 = vadd.f32 %v727, %v1312
      %v1627 = vadd.f32 %v732, %v1317
      %v1628 = vadd.f32 %v735, %v1320
      %v1629 = vadd.f32 %v740, %v1325
      %v1630 = vadd.f32 %v743, %v1328
      %v1631 = vadd.f32 %v748, %v1333
      %v1632 = vadd.f32 %v751, %v1336
      %v1633 = vadd.f32 %v756, %v1341
      %v1634 = vadd.f32 %v759, %v1344
      %v1635 = vadd.f32 %v764, %v1349
      %v1636 = vadd.f32 %v767, %v1352
      %v1637 = vadd.f32 %v772, %v1357
      %v1638 = vadd.f32 %v775, %v1360
      %v1639 = vadd.f32 %v780, %v1365
      %v1640 = vadd.f32 %v783, %v1368
      %v1641 = vadd.f32 %v788, %v1373
      %v1642 = vadd.f32 %v791, %v1376
      %v1643 = vadd.f32 %v796, %v1381
      %v1644 = vadd.f32 %v799, %v1384
      %v1645 = vadd.f32 %v804, %v1389
      %v1646 = vadd.f32 %v807, %v1392
      %v1647 = vadd.f32 %v812, %v1397
      %v1648 = vadd.f32 %v815, %v1400
      %v1649 = vadd.f32 %v820, %v1405
      %v1650 = vadd.f32 %v823, %v1408
      %v1651 = vadd.f32 %v828, %v1413
      %v1652 = vadd.f32 %v831, %v1416
      %v1653 = vadd.f32 %v836, %v1421
      %v1654 = vadd.f32 %v839, %v1424
      %v1655 = vadd.f32 %v844, %v1429
      %v1656 = vadd.f32 %v847, %v1432
      %v1657 = vadd.f32 %v852, %v1437
      %v1658 = vadd.f32 %v855, %v1440
      %v1659 = vadd.f32 %v860, %v1445
      %v1660 = vadd.f32 %v863, %v1448
      %v1661 = vadd.f32 %v868, %v1453
      %v1662 = vadd.f32 %v871, %v1456
      %v1663 = vadd.f32 %v876, %v1461
      %v1664 = vadd.f32 %v879, %v1464
      %v1665 = vadd.f32 %v884, %v1469
      %v1666 = vadd.f32 %v887, %v1472
      %v1667 = vmax.f32 %v1603, 0.0
      %v1668 = vmax.f32 %v1604, 0.0
      %v1669 = vmax.f32 %v1605, 0.0
      %v1670 = vmax.f32 %v1606, 0.0
      %v1671 = vmax.f32 %v1607, 0.0
      %v1672 = vmax.f32 %v1608, 0.0
      %v1673 = vmax.f32 %v1609, 0.0
      %v1674 = vmax.f32 %v1610, 0.0
      %v1675 = vmax.f32 %v1611, 0.0
      %v1676 = vmax.f32 %v1612, 0.0
      %v1677 = vmax.f32 %v1613, 0.0
      %v1678 = vmax.f32 %v1614, 0.0
      %v1679 = vmax.f32 %v1615, 0.0
      %v1680 = vmax.f32 %v1616, 0.0
      %v1681 = vmax.f32 %v1617, 0.0
      %v1682 = vmax.f32 %v1618, 0.0
      %v1683 = vmax.f32 %v1619, 0.0
      %v1684 = vmax.f32 %v1620, 0.0
      %v1685 = vmax.f32 %v1621, 0.0
      %v1686 = vmax.f32 %v1622, 0.0
      %v1687 = vmax.f32 %v1623, 0.0
      %v1688 = vmax.f32 %v1624, 0.0
      %v1689 = vmax.f32 %v1625, 0.0
      %v1690 = vmax.f32 %v1626, 0.0
      %v1691 = vmax.f32 %v1627, 0.0
      %v1692 = vmax.f32 %v1628, 0.0
      %v1693 = vmax.f32 %v1629, 0.0
      %v1694 = vmax.f32 %v1630, 0.0
      %v1695 = vmax.f32 %v1631, 0.0
      %v1696 = vmax.f32 %v1632, 0.0
      %v1697 = vmax.f32 %v1633, 0.0
      %v1698 = vmax.f32 %v1634, 0.0
      %v1699 = vmax.f32 %v1635, 0.0
      %v1700 = vmax.f32 %v1636, 0.0
      %v1701 = vmax.f32 %v1637, 0.0
      %v1702 = vmax.f32 %v1638, 0.0
      %v1703 = vmax.f32 %v1639, 0.0
      %v1704 = vmax.f32 %v1640, 0.0
      %v1705 = vmax.f32 %v1641, 0.0
      %v1706 = vmax.f32 %v1642, 0.0
      %v1707 = vmax.f32 %v1643, 0.0
      %v1708 = vmax.f32 %v1644, 0.0
      %v1709 = vmax.f32 %v1645, 0.0
      %v1710 = vmax.f32 %v1646, 0.0
      %v1711 = vmax.f32 %v1647, 0.0
      %v1712 = vmax.f32 %v1648, 0.0
      %v1713 = vmax.f32 %v1649, 0.0
      %v1714 = vmax.f32 %v1650, 0.0
      %v1715 = vmax.f32 %v1651, 0.0
      %v1716 = vmax.f32 %v1652, 0.0
      %v1717 = vmax.f32 %v1653, 0.0
      %v1718 = vmax.f32 %v1654, 0.0
      %v1719 = vmax.f32 %v1655, 0.0
      %v1720 = vmax.f32 %v1656, 0.0
      %v1721 = vmax.f32 %v1657, 0.0
      %v1722 = vmax.f32 %v1658, 0.0
      %v1723 = vmax.f32 %v1659, 0.0
      %v1724 = vmax.f32 %v1660, 0.0
      %v1725 = vmax.f32 %v1661, 0.0
      %v1726 = vmax.f32 %v1662, 0.0
      %v1727 = vmax.f32 %v1663, 0.0
      %v1728 = vmax.f32 %v1664, 0.0
      %v1729 = vmax.f32 %v1665, 0.0
      %v1730 = vmax.f32 %v1666, 0.0
      %v1731 = vpack.c.bf16 %v1668, %v1667
      %v1732 = vpack.c.bf16 %v1670, %v1669
      %v1733 = vpack.c.bf16 %v1672, %v1671
      %v1734 = vpack.c.bf16 %v1674, %v1673
      %v1735 = vpack.c.bf16 %v1676, %v1675
      %v1736 = vpack.c.bf16 %v1678, %v1677
      %v1737 = vpack.c.bf16 %v1680, %v1679
      %v1738 = vpack.c.bf16 %v1682, %v1681
      %v1739 = vpack.c.bf16 %v1684, %v1683
      %v1740 = vpack.c.bf16 %v1686, %v1685
      %v1741 = vpack.c.bf16 %v1688, %v1687
      %v1742 = vpack.c.bf16 %v1690, %v1689
      %v1743 = vpack.c.bf16 %v1692, %v1691
      %v1744 = vpack.c.bf16 %v1694, %v1693
      %v1745 = vpack.c.bf16 %v1696, %v1695
      %v1746 = vpack.c.bf16 %v1698, %v1697
      %v1747 = vpack.c.bf16 %v1700, %v1699
      %v1748 = vpack.c.bf16 %v1702, %v1701
      %v1749 = vpack.c.bf16 %v1704, %v1703
      %v1750 = vpack.c.bf16 %v1706, %v1705
      %v1751 = vpack.c.bf16 %v1708, %v1707
      %v1752 = vpack.c.bf16 %v1710, %v1709
      %v1753 = vpack.c.bf16 %v1712, %v1711
      %v1754 = vpack.c.bf16 %v1714, %v1713
      %v1755 = vpack.c.bf16 %v1716, %v1715
      %v1756 = vpack.c.bf16 %v1718, %v1717
      %v1757 = vpack.c.bf16 %v1720, %v1719
      %v1758 = vpack.c.bf16 %v1722, %v1721
      %v1759 = vpack.c.bf16 %v1724, %v1723
      %v1760 = vpack.c.bf16 %v1726, %v1725
      %v1761 = vpack.c.bf16 %v1728, %v1727
      %v1762 = vpack.c.bf16 %v1730, %v1729
      %v1763 = vld [vmem:[%s4] sm:$0xf]
      %v1764 = vld [vmem:[%s4 + $0x4] sm:$0xf]
      %v1765 = vld [vmem:[%s4 + $0x8] sm:$0xf]
      %v1766 = vld [vmem:[%s4 + $0xc] sm:$0xf]
      %v1767 = vld [vmem:[%s4 + $0x10] sm:$0xf]
      %v1768 = vld [vmem:[%s4 + $0x14] sm:$0xf]
      %v1769 = vld [vmem:[%s4 + $0x18] sm:$0xf]
      %v1770 = vld [vmem:[%s4 + $0x1c] sm:$0xf]
      %1803 = vrot.lane.b32.xlu0 %v1731, 64
      %v1804 = vpop.permute.xlu0 %1803
      %1805 = vrot.lane.b32.xlu0 %v1732, 64
      %v1806 = vpop.permute.xlu0 %1805
      %1807 = vrot.lane.b32.xlu0 %v1733, 64
      %v1808 = vpop.permute.xlu0 %1807
      %1809 = vrot.lane.b32.xlu0 %v1734, 64
      %v1810 = vpop.permute.xlu0 %1809
      %1811 = vrot.lane.b32.xlu0 %v1735, 64
      %v1812 = vpop.permute.xlu0 %1811
      %1813 = vrot.lane.b32.xlu0 %v1736, 64
      %v1814 = vpop.permute.xlu0 %1813
      %1815 = vrot.lane.b32.xlu0 %v1737, 64
      %v1816 = vpop.permute.xlu0 %1815
      %1817 = vrot.lane.b32.xlu0 %v1738, 64
      %v1818 = vpop.permute.xlu0 %1817
      %1819 = vrot.lane.b32.xlu0 %v1739, 64
      %v1820 = vpop.permute.xlu0 %1819
      %1821 = vrot.lane.b32.xlu0 %v1740, 64
      %v1822 = vpop.permute.xlu0 %1821
      %1823 = vrot.lane.b32.xlu0 %v1741, 64
      %v1824 = vpop.permute.xlu0 %1823
      %1825 = vrot.lane.b32.xlu0 %v1742, 64
      %v1826 = vpop.permute.xlu0 %1825
      %1827 = vrot.lane.b32.xlu0 %v1743, 64
      %v1828 = vpop.permute.xlu0 %1827
      %1829 = vrot.lane.b32.xlu0 %v1744, 64
      %v1830 = vpop.permute.xlu0 %1829
      %1831 = vrot.lane.b32.xlu0 %v1745, 64
      %v1832 = vpop.permute.xlu0 %1831
      %1833 = vrot.lane.b32.xlu0 %v1746, 64
      %v1834 = vpop.permute.xlu0 %1833
      %1835 = vrot.lane.b32.xlu0 %v1747, 64
      %v1836 = vpop.permute.xlu0 %1835
      %1837 = vrot.lane.b32.xlu0 %v1748, 64
      %v1838 = vpop.permute.xlu0 %1837
      %1839 = vrot.lane.b32.xlu0 %v1749, 64
      %v1840 = vpop.permute.xlu0 %1839
      %1841 = vrot.lane.b32.xlu0 %v1750, 64
      %v1842 = vpop.permute.xlu0 %1841
      %1843 = vrot.lane.b32.xlu0 %v1751, 64
      %v1844 = vpop.permute.xlu0 %1843
      %1845 = vrot.lane.b32.xlu0 %v1752, 64
      %v1846 = vpop.permute.xlu0 %1845
      %1847 = vrot.lane.b32.xlu0 %v1753, 64
      %v1848 = vpop.permute.xlu0 %1847
      %1849 = vrot.lane.b32.xlu0 %v1754, 64
      %v1850 = vpop.permute.xlu0 %1849
      %1851 = vrot.lane.b32.xlu0 %v1755, 64
      %v1852 = vpop.permute.xlu0 %1851
      %1853 = vrot.lane.b32.xlu0 %v1756, 64
      %v1854 = vpop.permute.xlu0 %1853
      %1855 = vrot.lane.b32.xlu0 %v1757, 64
      %v1856 = vpop.permute.xlu0 %1855
      %1857 = vrot.lane.b32.xlu0 %v1758, 64
      %v1858 = vpop.permute.xlu0 %1857
      %1859 = vrot.lane.b32.xlu0 %v1759, 64
      %v1860 = vpop.permute.xlu0 %1859
      %1861 = vrot.lane.b32.xlu0 %v1760, 64
      %v1862 = vpop.permute.xlu0 %1861
      %1863 = vrot.lane.b32.xlu0 %v1761, 64
      %v1864 = vpop.permute.xlu0 %1863
      %1865 = vrot.lane.b32.xlu0 %v1762, 64
      %v1866 = vpop.permute.xlu0 %1865
      %v1875 = vunpack.c.l.b16 %v1763
      %v1876 = vunpack.c.l.b16 %v1764
      %v1877 = vunpack.c.l.b16 %v1765
      %v1878 = vunpack.c.l.b16 %v1766
      %v1879 = vunpack.c.l.b16 %v1767
      %v1880 = vunpack.c.l.b16 %v1768
      %v1881 = vunpack.c.l.b16 %v1769
      %v1882 = vunpack.c.l.b16 %v1770
      %v1883 = vpack.c.b16 %v1876, %v1875
      %v1884 = vpack.c.b16 %v1878, %v1877
      %v1885 = vpack.c.b16 %v1880, %v1879
      %v1886 = vpack.c.b16 %v1882, %v1881
      %v1892 = vsel %vm1089, %v1804, 0
      %v1895 = vsel %vm1089, %v1806, 0
      %v1898 = vsel %vm1089, %v1808, 0
      %v1901 = vsel %vm1089, %v1810, 0
      %v1904 = vsel %vm1089, %v1812, 0
      %v1907 = vsel %vm1089, %v1814, 0
      %v1910 = vsel %vm1089, %v1816, 0
      %v1913 = vsel %vm1089, %v1818, 0
      %v1916 = vsel %vm1089, %v1820, 0
      %v1919 = vsel %vm1089, %v1822, 0
      %v1922 = vsel %vm1089, %v1824, 0
      %v1925 = vsel %vm1089, %v1826, 0
      %v1928 = vsel %vm1089, %v1828, 0
      %v1931 = vsel %vm1089, %v1830, 0
      %v1934 = vsel %vm1089, %v1832, 0
      %v1937 = vsel %vm1089, %v1834, 0
      %v1940 = vsel %vm1089, %v1836, 0
      %v1943 = vsel %vm1089, %v1838, 0
      %v1946 = vsel %vm1089, %v1840, 0
      %v1949 = vsel %vm1089, %v1842, 0
      %v1952 = vsel %vm1089, %v1844, 0
      %v1955 = vsel %vm1089, %v1846, 0
      %v1958 = vsel %vm1089, %v1848, 0
      %v1961 = vsel %vm1089, %v1850, 0
      %v1964 = vsel %vm1089, %v1852, 0
      %v1967 = vsel %vm1089, %v1854, 0
      %v1970 = vsel %vm1089, %v1856, 0
      %v1973 = vsel %vm1089, %v1858, 0
      %v1976 = vsel %vm1089, %v1860, 0
      %v1979 = vsel %vm1089, %v1862, 0
      %v1982 = vsel %vm1089, %v1864, 0
      %v1985 = vsel %vm1089, %v1866, 0
      %1987 = vmatprep.subr.bf16.mxu0 0
      %1988 = vmatpush1.bf16.msra.mxu0 %v1883
      %1989 = vmatprep.subr.bf16.mxu0 0
      %1990 = vmatpush1.bf16.msra.mxu0 %v1884
      %1991 = vmatprep.subr.bf16.mxu0 0
      %1992 = vmatpush1.bf16.msra.mxu0 %v1885
      %1993 = vmatprep.subr.bf16.mxu0 0
      %1994 = vmatpush1.bf16.msra.mxu0 %v1886
      %1995 = vmatprep.subr.bf16.mxu0 0
      %1996 = vmatpush1.bf16.msra.mxu0 0
      %1997 = vmatprep.subr.bf16.mxu0 0
      %1998 = vmatpush1.bf16.msra.mxu0 0
      %1999 = vmatprep.subr.bf16.mxu0 0
      %2000 = vmatpush1.bf16.msra.mxu0 0
      %2001 = vmatprep.subr.bf16.mxu0 0
      %2002 = vmatpush1.bf16.msra.mxu0 0
      %2003 = vmatprep.subr.bf16.mxu0 0
      %2004 = vmatpush1.bf16.msra.mxu0 0
      %2005 = vmatprep.subr.bf16.mxu0 0
      %2006 = vmatpush1.bf16.msra.mxu0 0
      %2007 = vmatprep.subr.bf16.mxu0 0
      %2008 = vmatpush1.bf16.msra.mxu0 0
      %2009 = vmatprep.subr.bf16.mxu0 0
      %2010 = vmatpush1.bf16.msra.mxu0 0
      %2011 = vmatprep.subr.bf16.mxu0 0
      %2012 = vmatpush1.bf16.msra.mxu0 0
      %2013 = vmatprep.subr.bf16.mxu0 0
      %2014 = vmatpush1.bf16.msra.mxu0 0
      %2015 = vmatprep.subr.bf16.mxu0 0
      %2016 = vmatpush1.bf16.msra.mxu0 0
      %2017 = vmatprep.subr.bf16.mxu0 0
      %2018 = vmatpush1.bf16.msra.mxu0 0
      %2019 = vmatprep.mubr.bf16.mxu0 0
      %2020 = vmatmul.mubr.bf16.gmra.mrb[0].mxu0 %v1892
      %v2021 = vpop.f32.mrb[0].mxu0
      %v2022 = vadd.f32 0.0, %v2021
      %v2023 = vpop.f32.mrb[0].mxu0
      %v2024 = vpop.f32.mrb[0].mxu0
      %v2025 = vadd.f32 0.0, %v2024
      %v2026 = vpop.f32.mrb[0].mxu0
      %2027 = vmatprep.mubr.bf16.mxu0 0
      %2028 = vmatmul.mubr.bf16.gmra.mrb[0].mxu0 %v1895
      %v2029 = vpop.f32.mrb[0].mxu0
      %v2030 = vadd.f32 0.0, %v2029
      %v2031 = vpop.f32.mrb[0].mxu0
      %v2032 = vpop.f32.mrb[0].mxu0
      %v2033 = vadd.f32 0.0, %v2032
      %v2034 = vpop.f32.mrb[0].mxu0
      %2035 = vmatprep.mubr.bf16.mxu0 0
      %2036 = vmatmul.mubr.bf16.gmra.mrb[0].mxu0 %v1898
      %v2037 = vpop.f32.mrb[0].mxu0
      %v2038 = vadd.f32 0.0, %v2037
      %v2039 = vpop.f32.mrb[0].mxu0
      %v2040 = vpop.f32.mrb[0].mxu0
      %v2041 = vadd.f32 0.0, %v2040
      %v2042 = vpop.f32.mrb[0].mxu0
      %2043 = vmatprep.mubr.bf16.mxu0 0
      %2044 = vmatmul.mubr.bf16.gmra.mrb[0].mxu0 %v1901
      %v2045 = vpop.f32.mrb[0].mxu0
      %v2046 = vadd.f32 0.0, %v2045
      %v2047 = vpop.f32.mrb[0].mxu0
      %v2048 = vpop.f32.mrb[0].mxu0
      %v2049 = vadd.f32 0.0, %v2048
      %v2050 = vpop.f32.mrb[0].mxu0
      %2051 = vmatprep.mubr.bf16.mxu0 0
      %2052 = vmatmul.mubr.bf16.gmra.mrb[0].mxu0 %v1904
      %v2053 = vpop.f32.mrb[0].mxu0
      %v2054 = vadd.f32 0.0, %v2053
      %v2055 = vpop.f32.mrb[0].mxu0
      %v2056 = vpop.f32.mrb[0].mxu0
      %v2057 = vadd.f32 0.0, %v2056
      %v2058 = vpop.f32.mrb[0].mxu0
      %2059 = vmatprep.mubr.bf16.mxu0 0
      %2060 = vmatmul.mubr.bf16.gmra.mrb[0].mxu0 %v1907
      %v2061 = vpop.f32.mrb[0].mxu0
      %v2062 = vadd.f32 0.0, %v2061
      %v2063 = vpop.f32.mrb[0].mxu0
      %v2064 = vpop.f32.mrb[0].mxu0
      %v2065 = vadd.f32 0.0, %v2064
      %v2066 = vpop.f32.mrb[0].mxu0
      %2067 = vmatprep.mubr.bf16.mxu0 0
      %2068 = vmatmul.mubr.bf16.gmra.mrb[0].mxu0 %v1910
      %v2069 = vpop.f32.mrb[0].mxu0
      %v2070 = vadd.f32 0.0, %v2069
      %v2071 = vpop.f32.mrb[0].mxu0
      %v2072 = vpop.f32.mrb[0].mxu0
      %v2073 = vadd.f32 0.0, %v2072
      %v2074 = vpop.f32.mrb[0].mxu0
      %2075 = vmatprep.mubr.bf16.mxu0 0
      %2076 = vmatmul.mubr.bf16.gmra.mrb[0].mxu0 %v1913
      %v2077 = vpop.f32.mrb[0].mxu0
      %v2078 = vadd.f32 0.0, %v2077
      %v2079 = vpop.f32.mrb[0].mxu0
      %v2080 = vpop.f32.mrb[0].mxu0
      %v2081 = vadd.f32 0.0, %v2080
      %v2082 = vpop.f32.mrb[0].mxu0
      %2083 = vmatprep.mubr.bf16.mxu0 0
      %2084 = vmatmul.mubr.bf16.gmra.mrb[0].mxu0 %v1916
      %v2085 = vpop.f32.mrb[0].mxu0
      %v2086 = vadd.f32 0.0, %v2085
      %v2087 = vpop.f32.mrb[0].mxu0
      %v2088 = vpop.f32.mrb[0].mxu0
      %v2089 = vadd.f32 0.0, %v2088
      %v2090 = vpop.f32.mrb[0].mxu0
      %2091 = vmatprep.mubr.bf16.mxu0 0
      %2092 = vmatmul.mubr.bf16.gmra.mrb[0].mxu0 %v1919
      %v2093 = vpop.f32.mrb[0].mxu0
      %v2094 = vadd.f32 0.0, %v2093
      %v2095 = vpop.f32.mrb[0].mxu0
      %v2096 = vpop.f32.mrb[0].mxu0
      %v2097 = vadd.f32 0.0, %v2096
      %v2098 = vpop.f32.mrb[0].mxu0
      %2099 = vmatprep.mubr.bf16.mxu0 0
      %2100 = vmatmul.mubr.bf16.gmra.mrb[0].mxu0 %v1922
      %v2101 = vpop.f32.mrb[0].mxu0
      %v2102 = vadd.f32 0.0, %v2101
      %v2103 = vpop.f32.mrb[0].mxu0
      %v2104 = vpop.f32.mrb[0].mxu0
      %v2105 = vadd.f32 0.0, %v2104
      %v2106 = vpop.f32.mrb[0].mxu0
      %2107 = vmatprep.mubr.bf16.mxu0 0
      %2108 = vmatmul.mubr.bf16.gmra.mrb[0].mxu0 %v1925
      %v2109 = vpop.f32.mrb[0].mxu0
      %v2110 = vadd.f32 0.0, %v2109
      %v2111 = vpop.f32.mrb[0].mxu0
      %v2112 = vpop.f32.mrb[0].mxu0
      %v2113 = vadd.f32 0.0, %v2112
      %v2114 = vpop.f32.mrb[0].mxu0
      %2115 = vmatprep.mubr.bf16.mxu0 0
      %2116 = vmatmul.mubr.bf16.gmra.mrb[0].mxu0 %v1928
      %v2117 = vpop.f32.mrb[0].mxu0
      %v2118 = vadd.f32 0.0, %v2117
      %v2119 = vpop.f32.mrb[0].mxu0
      %v2120 = vpop.f32.mrb[0].mxu0
      %v2121 = vadd.f32 0.0, %v2120
      %v2122 = vpop.f32.mrb[0].mxu0
      %2123 = vmatprep.mubr.bf16.mxu0 0
      %2124 = vmatmul.mubr.bf16.gmra.mrb[0].mxu0 %v1931
      %v2125 = vpop.f32.mrb[0].mxu0
      %v2126 = vadd.f32 0.0, %v2125
      %v2127 = vpop.f32.mrb[0].mxu0
      %v2128 = vpop.f32.mrb[0].mxu0
      %v2129 = vadd.f32 0.0, %v2128
      %v2130 = vpop.f32.mrb[0].mxu0
      %2131 = vmatprep.mubr.bf16.mxu0 0
      %2132 = vmatmul.mubr.bf16.gmra.mrb[0].mxu0 %v1934
      %v2133 = vpop.f32.mrb[0].mxu0
      %v2134 = vadd.f32 0.0, %v2133
      %v2135 = vpop.f32.mrb[0].mxu0
      %v2136 = vpop.f32.mrb[0].mxu0
      %v2137 = vadd.f32 0.0, %v2136
      %v2138 = vpop.f32.mrb[0].mxu0
      %2139 = vmatprep.mubr.bf16.mxu0 0
      %2140 = vmatmul.mubr.bf16.gmra.mrb[0].mxu0 %v1937
      %v2141 = vpop.f32.mrb[0].mxu0
      %v2142 = vadd.f32 0.0, %v2141
      %v2143 = vpop.f32.mrb[0].mxu0
      %v2144 = vpop.f32.mrb[0].mxu0
      %v2145 = vadd.f32 0.0, %v2144
      %v2146 = vpop.f32.mrb[0].mxu0
      %2147 = vmatprep.mubr.bf16.mxu0 0
      %2148 = vmatmul.mubr.bf16.gmra.mrb[0].mxu0 %v1940
      %v2149 = vpop.f32.mrb[0].mxu0
      %v2150 = vadd.f32 0.0, %v2149
      %v2151 = vpop.f32.mrb[0].mxu0
      %v2152 = vpop.f32.mrb[0].mxu0
      %v2153 = vadd.f32 0.0, %v2152
      %v2154 = vpop.f32.mrb[0].mxu0
      %2155 = vmatprep.mubr.bf16.mxu0 0
      %2156 = vmatmul.mubr.bf16.gmra.mrb[0].mxu0 %v1943
      %v2157 = vpop.f32.mrb[0].mxu0
      %v2158 = vadd.f32 0.0, %v2157
      %v2159 = vpop.f32.mrb[0].mxu0
      %v2160 = vpop.f32.mrb[0].mxu0
      %v2161 = vadd.f32 0.0, %v2160
      %v2162 = vpop.f32.mrb[0].mxu0
      %2163 = vmatprep.mubr.bf16.mxu0 0
      %2164 = vmatmul.mubr.bf16.gmra.mrb[0].mxu0 %v1946
      %v2165 = vpop.f32.mrb[0].mxu0
      %v2166 = vadd.f32 0.0, %v2165
      %v2167 = vpop.f32.mrb[0].mxu0
      %v2168 = vpop.f32.mrb[0].mxu0
      %v2169 = vadd.f32 0.0, %v2168
      %v2170 = vpop.f32.mrb[0].mxu0
      %2171 = vmatprep.mubr.bf16.mxu0 0
      %2172 = vmatmul.mubr.bf16.gmra.mrb[0].mxu0 %v1949
      %v2173 = vpop.f32.mrb[0].mxu0
      %v2174 = vadd.f32 0.0, %v2173
      %v2175 = vpop.f32.mrb[0].mxu0
      %v2176 = vpop.f32.mrb[0].mxu0
      %v2177 = vadd.f32 0.0, %v2176
      %v2178 = vpop.f32.mrb[0].mxu0
      %2179 = vmatprep.mubr.bf16.mxu0 0
      %2180 = vmatmul.mubr.bf16.gmra.mrb[0].mxu0 %v1952
      %v2181 = vpop.f32.mrb[0].mxu0
      %v2182 = vadd.f32 0.0, %v2181
      %v2183 = vpop.f32.mrb[0].mxu0
      %v2184 = vpop.f32.mrb[0].mxu0
      %v2185 = vadd.f32 0.0, %v2184
      %v2186 = vpop.f32.mrb[0].mxu0
      %2187 = vmatprep.mubr.bf16.mxu0 0
      %2188 = vmatmul.mubr.bf16.gmra.mrb[0].mxu0 %v1955
      %v2189 = vpop.f32.mrb[0].mxu0
      %v2190 = vadd.f32 0.0, %v2189
      %v2191 = vpop.f32.mrb[0].mxu0
      %v2192 = vpop.f32.mrb[0].mxu0
      %v2193 = vadd.f32 0.0, %v2192
      %v2194 = vpop.f32.mrb[0].mxu0
      %2195 = vmatprep.mubr.bf16.mxu0 0
      %2196 = vmatmul.mubr.bf16.gmra.mrb[0].mxu0 %v1958
      %v2197 = vpop.f32.mrb[0].mxu0
      %v2198 = vadd.f32 0.0, %v2197
      %v2199 = vpop.f32.mrb[0].mxu0
      %v2200 = vpop.f32.mrb[0].mxu0
      %v2201 = vadd.f32 0.0, %v2200
      %v2202 = vpop.f32.mrb[0].mxu0
      %2203 = vmatprep.mubr.bf16.mxu0 0
      %2204 = vmatmul.mubr.bf16.gmra.mrb[0].mxu0 %v1961
      %v2205 = vpop.f32.mrb[0].mxu0
      %v2206 = vadd.f32 0.0, %v2205
      %v2207 = vpop.f32.mrb[0].mxu0
      %v2208 = vpop.f32.mrb[0].mxu0
      %v2209 = vadd.f32 0.0, %v2208
      %v2210 = vpop.f32.mrb[0].mxu0
      %2211 = vmatprep.mubr.bf16.mxu0 0
      %2212 = vmatmul.mubr.bf16.gmra.mrb[0].mxu0 %v1964
      %v2213 = vpop.f32.mrb[0].mxu0
      %v2214 = vadd.f32 0.0, %v2213
      %v2215 = vpop.f32.mrb[0].mxu0
      %v2216 = vpop.f32.mrb[0].mxu0
      %v2217 = vadd.f32 0.0, %v2216
      %v2218 = vpop.f32.mrb[0].mxu0
      %2219 = vmatprep.mubr.bf16.mxu0 0
      %2220 = vmatmul.mubr.bf16.gmra.mrb[0].mxu0 %v1967
      %v2221 = vpop.f32.mrb[0].mxu0
      %v2222 = vadd.f32 0.0, %v2221
      %v2223 = vpop.f32.mrb[0].mxu0
      %v2224 = vpop.f32.mrb[0].mxu0
      %v2225 = vadd.f32 0.0, %v2224
      %v2226 = vpop.f32.mrb[0].mxu0
      %2227 = vmatprep.mubr.bf16.mxu0 0
      %2228 = vmatmul.mubr.bf16.gmra.mrb[0].mxu0 %v1970
      %v2229 = vpop.f32.mrb[0].mxu0
      %v2230 = vadd.f32 0.0, %v2229
      %v2231 = vpop.f32.mrb[0].mxu0
      %v2232 = vpop.f32.mrb[0].mxu0
      %v2233 = vadd.f32 0.0, %v2232
      %v2234 = vpop.f32.mrb[0].mxu0
      %2235 = vmatprep.mubr.bf16.mxu0 0
      %2236 = vmatmul.mubr.bf16.gmra.mrb[0].mxu0 %v1973
      %v2237 = vpop.f32.mrb[0].mxu0
      %v2238 = vadd.f32 0.0, %v2237
      %v2239 = vpop.f32.mrb[0].mxu0
      %v2240 = vpop.f32.mrb[0].mxu0
      %v2241 = vadd.f32 0.0, %v2240
      %v2242 = vpop.f32.mrb[0].mxu0
      %2243 = vmatprep.mubr.bf16.mxu0 0
      %2244 = vmatmul.mubr.bf16.gmra.mrb[0].mxu0 %v1976
      %v2245 = vpop.f32.mrb[0].mxu0
      %v2246 = vadd.f32 0.0, %v2245
      %v2247 = vpop.f32.mrb[0].mxu0
      %v2248 = vpop.f32.mrb[0].mxu0
      %v2249 = vadd.f32 0.0, %v2248
      %v2250 = vpop.f32.mrb[0].mxu0
      %2251 = vmatprep.mubr.bf16.mxu0 0
      %2252 = vmatmul.mubr.bf16.gmra.mrb[0].mxu0 %v1979
      %v2253 = vpop.f32.mrb[0].mxu0
      %v2254 = vadd.f32 0.0, %v2253
      %v2255 = vpop.f32.mrb[0].mxu0
      %v2256 = vpop.f32.mrb[0].mxu0
      %v2257 = vadd.f32 0.0, %v2256
      %v2258 = vpop.f32.mrb[0].mxu0
      %2259 = vmatprep.mubr.bf16.mxu0 0
      %2260 = vmatmul.mubr.bf16.gmra.mrb[0].mxu0 %v1982
      %v2261 = vpop.f32.mrb[0].mxu0
      %v2262 = vadd.f32 0.0, %v2261
      %v2263 = vpop.f32.mrb[0].mxu0
      %v2264 = vpop.f32.mrb[0].mxu0
      %v2265 = vadd.f32 0.0, %v2264
      %v2266 = vpop.f32.mrb[0].mxu0
      %2267 = vmatprep.mubr.bf16.mxu0 0
      %2268 = vmatmul.mubr.bf16.gmra.mrb[0].mxu0 %v1985
      %v2269 = vpop.f32.mrb[0].mxu0
      %v2270 = vadd.f32 0.0, %v2269
      %v2271 = vpop.f32.mrb[0].mxu0
      %v2272 = vpop.f32.mrb[0].mxu0
      %v2273 = vadd.f32 0.0, %v2272
      %v2274 = vpop.f32.mrb[0].mxu0
      %2275 = vdwg.mxu0
      %v2276 = vmax.f32 %v2022, 0.0
      %v2277 = vmax.f32 %v2025, 0.0
      %v2278 = vmax.f32 %v2030, 0.0
      %v2279 = vmax.f32 %v2033, 0.0
      %v2280 = vmax.f32 %v2038, 0.0
      %v2281 = vmax.f32 %v2041, 0.0
      %v2282 = vmax.f32 %v2046, 0.0
      %v2283 = vmax.f32 %v2049, 0.0
      %v2284 = vmax.f32 %v2054, 0.0
      %v2285 = vmax.f32 %v2057, 0.0
      %v2286 = vmax.f32 %v2062, 0.0
      %v2287 = vmax.f32 %v2065, 0.0
      %v2288 = vmax.f32 %v2070, 0.0
      %v2289 = vmax.f32 %v2073, 0.0
      %v2290 = vmax.f32 %v2078, 0.0
      %v2291 = vmax.f32 %v2081, 0.0
      %v2292 = vmax.f32 %v2086, 0.0
      %v2293 = vmax.f32 %v2089, 0.0
      %v2294 = vmax.f32 %v2094, 0.0
      %v2295 = vmax.f32 %v2097, 0.0
      %v2296 = vmax.f32 %v2102, 0.0
      %v2297 = vmax.f32 %v2105, 0.0
      %v2298 = vmax.f32 %v2110, 0.0
      %v2299 = vmax.f32 %v2113, 0.0
      %v2300 = vmax.f32 %v2118, 0.0
      %v2301 = vmax.f32 %v2121, 0.0
      %v2302 = vmax.f32 %v2126, 0.0
      %v2303 = vmax.f32 %v2129, 0.0
      %v2304 = vmax.f32 %v2134, 0.0
      %v2305 = vmax.f32 %v2137, 0.0
      %v2306 = vmax.f32 %v2142, 0.0
      %v2307 = vmax.f32 %v2145, 0.0
      %v2308 = vmax.f32 %v2150, 0.0
      %v2309 = vmax.f32 %v2153, 0.0
      %v2310 = vmax.f32 %v2158, 0.0
      %v2311 = vmax.f32 %v2161, 0.0
      %v2312 = vmax.f32 %v2166, 0.0
      %v2313 = vmax.f32 %v2169, 0.0
      %v2314 = vmax.f32 %v2174, 0.0
      %v2315 = vmax.f32 %v2177, 0.0
      %v2316 = vmax.f32 %v2182, 0.0
      %v2317 = vmax.f32 %v2185, 0.0
      %v2318 = vmax.f32 %v2190, 0.0
      %v2319 = vmax.f32 %v2193, 0.0
      %v2320 = vmax.f32 %v2198, 0.0
      %v2321 = vmax.f32 %v2201, 0.0
      %v2322 = vmax.f32 %v2206, 0.0
      %v2323 = vmax.f32 %v2209, 0.0
      %v2324 = vmax.f32 %v2214, 0.0
      %v2325 = vmax.f32 %v2217, 0.0
      %v2326 = vmax.f32 %v2222, 0.0
      %v2327 = vmax.f32 %v2225, 0.0
      %v2328 = vmax.f32 %v2230, 0.0
      %v2329 = vmax.f32 %v2233, 0.0
      %v2330 = vmax.f32 %v2238, 0.0
      %v2331 = vmax.f32 %v2241, 0.0
      %v2332 = vmax.f32 %v2246, 0.0
      %v2333 = vmax.f32 %v2249, 0.0
      %v2334 = vmax.f32 %v2254, 0.0
      %v2335 = vmax.f32 %v2257, 0.0
      %v2336 = vmax.f32 %v2262, 0.0
      %v2337 = vmax.f32 %v2265, 0.0
      %v2338 = vmax.f32 %v2270, 0.0
      %v2339 = vmax.f32 %v2273, 0.0
      %v2340 = vpack.c.bf16 %v2277, %v2276
      %v2341 = vpack.c.bf16 %v2279, %v2278
      %v2342 = vpack.c.bf16 %v2281, %v2280
      %v2343 = vpack.c.bf16 %v2283, %v2282
      %v2344 = vpack.c.bf16 %v2285, %v2284
      %v2345 = vpack.c.bf16 %v2287, %v2286
      %v2346 = vpack.c.bf16 %v2289, %v2288
      %v2347 = vpack.c.bf16 %v2291, %v2290
      %v2348 = vpack.c.bf16 %v2293, %v2292
      %v2349 = vpack.c.bf16 %v2295, %v2294
      %v2350 = vpack.c.bf16 %v2297, %v2296
      %v2351 = vpack.c.bf16 %v2299, %v2298
      %v2352 = vpack.c.bf16 %v2301, %v2300
      %v2353 = vpack.c.bf16 %v2303, %v2302
      %v2354 = vpack.c.bf16 %v2305, %v2304
      %v2355 = vpack.c.bf16 %v2307, %v2306
      %v2356 = vpack.c.bf16 %v2309, %v2308
      %v2357 = vpack.c.bf16 %v2311, %v2310
      %v2358 = vpack.c.bf16 %v2313, %v2312
      %v2359 = vpack.c.bf16 %v2315, %v2314
      %v2360 = vpack.c.bf16 %v2317, %v2316
      %v2361 = vpack.c.bf16 %v2319, %v2318
      %v2362 = vpack.c.bf16 %v2321, %v2320
      %v2363 = vpack.c.bf16 %v2323, %v2322
      %v2364 = vpack.c.bf16 %v2325, %v2324
      %v2365 = vpack.c.bf16 %v2327, %v2326
      %v2366 = vpack.c.bf16 %v2329, %v2328
      %v2367 = vpack.c.bf16 %v2331, %v2330
      %v2368 = vpack.c.bf16 %v2333, %v2332
      %v2369 = vpack.c.bf16 %v2335, %v2334
      %v2370 = vpack.c.bf16 %v2337, %v2336
      %v2371 = vpack.c.bf16 %v2339, %v2338
      %v2372 = vld [vmem:[%s5] sm:$0xf]
      %v2373 = vld [vmem:[%s5 + $0x4] sm:$0xf]
      %v2374 = vld [vmem:[%s5 + $0x8] sm:$0xf]
      %v2375 = vld [vmem:[%s5 + $0xc] sm:$0xf]
      %v2376 = vld [vmem:[%s5 + $0x10] sm:$0xf]
      %v2377 = vld [vmem:[%s5 + $0x14] sm:$0xf]
      %v2378 = vld [vmem:[%s5 + $0x18] sm:$0xf]
      %v2379 = vld [vmem:[%s5 + $0x1c] sm:$0xf]
      %v2388 = vunpack.c.l.b16 %v2372
      %v2389 = vunpack.c.l.b16 %v2373
      %v2390 = vunpack.c.l.b16 %v2374
      %v2391 = vunpack.c.l.b16 %v2375
      %v2392 = vunpack.c.l.b16 %v2376
      %v2393 = vunpack.c.l.b16 %v2377
      %v2394 = vunpack.c.l.b16 %v2378
      %v2395 = vunpack.c.l.b16 %v2379
      %v2396 = vpack.c.b16 %v2389, %v2388
      %v2397 = vpack.c.b16 %v2391, %v2390
      %v2398 = vpack.c.b16 %v2393, %v2392
      %v2399 = vpack.c.b16 %v2395, %v2394
      %v2405 = vsel %vm1089, %v2340, 0
      %v2408 = vsel %vm1089, %v2341, 0
      %v2411 = vsel %vm1089, %v2342, 0
      %v2414 = vsel %vm1089, %v2343, 0
      %v2417 = vsel %vm1089, %v2344, 0
      %v2420 = vsel %vm1089, %v2345, 0
      %v2423 = vsel %vm1089, %v2346, 0
      %v2426 = vsel %vm1089, %v2347, 0
      %v2429 = vsel %vm1089, %v2348, 0
      %v2432 = vsel %vm1089, %v2349, 0
      %v2435 = vsel %vm1089, %v2350, 0
      %v2438 = vsel %vm1089, %v2351, 0
      %v2441 = vsel %vm1089, %v2352, 0
      %v2444 = vsel %vm1089, %v2353, 0
      %v2447 = vsel %vm1089, %v2354, 0
      %v2450 = vsel %vm1089, %v2355, 0
      %v2453 = vsel %vm1089, %v2356, 0
      %v2456 = vsel %vm1089, %v2357, 0
      %v2459 = vsel %vm1089, %v2358, 0
      %v2462 = vsel %vm1089, %v2359, 0
      %v2465 = vsel %vm1089, %v2360, 0
      %v2468 = vsel %vm1089, %v2361, 0
      %v2471 = vsel %vm1089, %v2362, 0
      %v2474 = vsel %vm1089, %v2363, 0
      %v2477 = vsel %vm1089, %v2364, 0
      %v2480 = vsel %vm1089, %v2365, 0
      %v2483 = vsel %vm1089, %v2366, 0
      %v2486 = vsel %vm1089, %v2367, 0
      %v2489 = vsel %vm1089, %v2368, 0
      %v2492 = vsel %vm1089, %v2369, 0
      %v2495 = vsel %vm1089, %v2370, 0
      %v2498 = vsel %vm1089, %v2371, 0
      %2500 = vmatprep.subr.bf16.mxu0 0
      %2501 = vmatpush1.bf16.msra.mxu0 %v2396
      %2502 = vmatprep.subr.bf16.mxu0 0
      %2503 = vmatpush1.bf16.msra.mxu0 %v2397
      %2504 = vmatprep.subr.bf16.mxu0 0
      %2505 = vmatpush1.bf16.msra.mxu0 %v2398
      %2506 = vmatprep.subr.bf16.mxu0 0
      %2507 = vmatpush1.bf16.msra.mxu0 %v2399
      %2508 = vmatprep.subr.bf16.mxu0 0
      %2509 = vmatpush1.bf16.msra.mxu0 0
      %2510 = vmatprep.subr.bf16.mxu0 0
      %2511 = vmatpush1.bf16.msra.mxu0 0
      %2512 = vmatprep.subr.bf16.mxu0 0
      %2513 = vmatpush1.bf16.msra.mxu0 0
      %2514 = vmatprep.subr.bf16.mxu0 0
      %2515 = vmatpush1.bf16.msra.mxu0 0
      %2516 = vmatprep.subr.bf16.mxu0 0
      %2517 = vmatpush1.bf16.msra.mxu0 0
      %2518 = vmatprep.subr.bf16.mxu0 0
      %2519 = vmatpush1.bf16.msra.mxu0 0
      %2520 = vmatprep.subr.bf16.mxu0 0
      %2521 = vmatpush1.bf16.msra.mxu0 0
      %2522 = vmatprep.subr.bf16.mxu0 0
      %2523 = vmatpush1.bf16.msra.mxu0 0
      %2524 = vmatprep.subr.bf16.mxu0 0
      %2525 = vmatpush1.bf16.msra.mxu0 0
      %2526 = vmatprep.subr.bf16.mxu0 0
      %2527 = vmatpush1.bf16.msra.mxu0 0
      %2528 = vmatprep.subr.bf16.mxu0 0
      %2529 = vmatpush1.bf16.msra.mxu0 0
      %2530 = vmatprep.subr.bf16.mxu0 0
      %2531 = vmatpush1.bf16.msra.mxu0 0
      %2532 = vmatprep.mubr.bf16.mxu0 0
      %2533 = vmatmul.mubr.bf16.gmra.mrb[0].mxu0 %v2405
      %v2534 = vpop.f32.mrb[0].mxu0
      %v2535 = vadd.f32 0.0, %v2534
      %v2536 = vpop.f32.mrb[0].mxu0
      %v2537 = vpop.f32.mrb[0].mxu0
      %v2538 = vadd.f32 0.0, %v2537
      %v2539 = vpop.f32.mrb[0].mxu0
      %2540 = vmatprep.mubr.bf16.mxu0 0
      %2541 = vmatmul.mubr.bf16.gmra.mrb[0].mxu0 %v2408
      %v2542 = vpop.f32.mrb[0].mxu0
      %v2543 = vadd.f32 0.0, %v2542
      %v2544 = vpop.f32.mrb[0].mxu0
      %v2545 = vpop.f32.mrb[0].mxu0
      %v2546 = vadd.f32 0.0, %v2545
      %v2547 = vpop.f32.mrb[0].mxu0
      %2548 = vmatprep.mubr.bf16.mxu0 0
      %2549 = vmatmul.mubr.bf16.gmra.mrb[0].mxu0 %v2411
      %v2550 = vpop.f32.mrb[0].mxu0
      %v2551 = vadd.f32 0.0, %v2550
      %v2552 = vpop.f32.mrb[0].mxu0
      %v2553 = vpop.f32.mrb[0].mxu0
      %v2554 = vadd.f32 0.0, %v2553
      %v2555 = vpop.f32.mrb[0].mxu0
      %2556 = vmatprep.mubr.bf16.mxu0 0
      %2557 = vmatmul.mubr.bf16.gmra.mrb[0].mxu0 %v2414
      %v2558 = vpop.f32.mrb[0].mxu0
      %v2559 = vadd.f32 0.0, %v2558
      %v2560 = vpop.f32.mrb[0].mxu0
      %v2561 = vpop.f32.mrb[0].mxu0
      %v2562 = vadd.f32 0.0, %v2561
      %v2563 = vpop.f32.mrb[0].mxu0
      %2564 = vmatprep.mubr.bf16.mxu0 0
      %2565 = vmatmul.mubr.bf16.gmra.mrb[0].mxu0 %v2417
      %v2566 = vpop.f32.mrb[0].mxu0
      %v2567 = vadd.f32 0.0, %v2566
      %v2568 = vpop.f32.mrb[0].mxu0
      %v2569 = vpop.f32.mrb[0].mxu0
      %v2570 = vadd.f32 0.0, %v2569
      %v2571 = vpop.f32.mrb[0].mxu0
      %2572 = vmatprep.mubr.bf16.mxu0 0
      %2573 = vmatmul.mubr.bf16.gmra.mrb[0].mxu0 %v2420
      %v2574 = vpop.f32.mrb[0].mxu0
      %v2575 = vadd.f32 0.0, %v2574
      %v2576 = vpop.f32.mrb[0].mxu0
      %v2577 = vpop.f32.mrb[0].mxu0
      %v2578 = vadd.f32 0.0, %v2577
      %v2579 = vpop.f32.mrb[0].mxu0
      %2580 = vmatprep.mubr.bf16.mxu0 0
      %2581 = vmatmul.mubr.bf16.gmra.mrb[0].mxu0 %v2423
      %v2582 = vpop.f32.mrb[0].mxu0
      %v2583 = vadd.f32 0.0, %v2582
      %v2584 = vpop.f32.mrb[0].mxu0
      %v2585 = vpop.f32.mrb[0].mxu0
      %v2586 = vadd.f32 0.0, %v2585
      %v2587 = vpop.f32.mrb[0].mxu0
      %2588 = vmatprep.mubr.bf16.mxu0 0
      %2589 = vmatmul.mubr.bf16.gmra.mrb[0].mxu0 %v2426
      %v2590 = vpop.f32.mrb[0].mxu0
      %v2591 = vadd.f32 0.0, %v2590
      %v2592 = vpop.f32.mrb[0].mxu0
      %v2593 = vpop.f32.mrb[0].mxu0
      %v2594 = vadd.f32 0.0, %v2593
      %v2595 = vpop.f32.mrb[0].mxu0
      %2596 = vmatprep.mubr.bf16.mxu0 0
      %2597 = vmatmul.mubr.bf16.gmra.mrb[0].mxu0 %v2429
      %v2598 = vpop.f32.mrb[0].mxu0
      %v2599 = vadd.f32 0.0, %v2598
      %v2600 = vpop.f32.mrb[0].mxu0
      %v2601 = vpop.f32.mrb[0].mxu0
      %v2602 = vadd.f32 0.0, %v2601
      %v2603 = vpop.f32.mrb[0].mxu0
      %2604 = vmatprep.mubr.bf16.mxu0 0
      %2605 = vmatmul.mubr.bf16.gmra.mrb[0].mxu0 %v2432
      %v2606 = vpop.f32.mrb[0].mxu0
      %v2607 = vadd.f32 0.0, %v2606
      %v2608 = vpop.f32.mrb[0].mxu0
      %v2609 = vpop.f32.mrb[0].mxu0
      %v2610 = vadd.f32 0.0, %v2609
      %v2611 = vpop.f32.mrb[0].mxu0
      %2612 = vmatprep.mubr.bf16.mxu0 0
      %2613 = vmatmul.mubr.bf16.gmra.mrb[0].mxu0 %v2435
      %v2614 = vpop.f32.mrb[0].mxu0
      %v2615 = vadd.f32 0.0, %v2614
      %v2616 = vpop.f32.mrb[0].mxu0
      %v2617 = vpop.f32.mrb[0].mxu0
      %v2618 = vadd.f32 0.0, %v2617
      %v2619 = vpop.f32.mrb[0].mxu0
      %2620 = vmatprep.mubr.bf16.mxu0 0
      %2621 = vmatmul.mubr.bf16.gmra.mrb[0].mxu0 %v2438
      %v2622 = vpop.f32.mrb[0].mxu0
      %v2623 = vadd.f32 0.0, %v2622
      %v2624 = vpop.f32.mrb[0].mxu0
      %v2625 = vpop.f32.mrb[0].mxu0
      %v2626 = vadd.f32 0.0, %v2625
      %v2627 = vpop.f32.mrb[0].mxu0
      %2628 = vmatprep.mubr.bf16.mxu0 0
      %2629 = vmatmul.mubr.bf16.gmra.mrb[0].mxu0 %v2441
      %v2630 = vpop.f32.mrb[0].mxu0
      %v2631 = vadd.f32 0.0, %v2630
      %v2632 = vpop.f32.mrb[0].mxu0
      %v2633 = vpop.f32.mrb[0].mxu0
      %v2634 = vadd.f32 0.0, %v2633
      %v2635 = vpop.f32.mrb[0].mxu0
      %2636 = vmatprep.mubr.bf16.mxu0 0
      %2637 = vmatmul.mubr.bf16.gmra.mrb[0].mxu0 %v2444
      %v2638 = vpop.f32.mrb[0].mxu0
      %v2639 = vadd.f32 0.0, %v2638
      %v2640 = vpop.f32.mrb[0].mxu0
      %v2641 = vpop.f32.mrb[0].mxu0
      %v2642 = vadd.f32 0.0, %v2641
      %v2643 = vpop.f32.mrb[0].mxu0
      %2644 = vmatprep.mubr.bf16.mxu0 0
      %2645 = vmatmul.mubr.bf16.gmra.mrb[0].mxu0 %v2447
      %v2646 = vpop.f32.mrb[0].mxu0
      %v2647 = vadd.f32 0.0, %v2646
      %v2648 = vpop.f32.mrb[0].mxu0
      %v2649 = vpop.f32.mrb[0].mxu0
      %v2650 = vadd.f32 0.0, %v2649
      %v2651 = vpop.f32.mrb[0].mxu0
      %2652 = vmatprep.mubr.bf16.mxu0 0
      %2653 = vmatmul.mubr.bf16.gmra.mrb[0].mxu0 %v2450
      %v2654 = vpop.f32.mrb[0].mxu0
      %v2655 = vadd.f32 0.0, %v2654
      %v2656 = vpop.f32.mrb[0].mxu0
      %v2657 = vpop.f32.mrb[0].mxu0
      %v2658 = vadd.f32 0.0, %v2657
      %v2659 = vpop.f32.mrb[0].mxu0
      %2660 = vmatprep.mubr.bf16.mxu0 0
      %2661 = vmatmul.mubr.bf16.gmra.mrb[0].mxu0 %v2453
      %v2662 = vpop.f32.mrb[0].mxu0
      %v2663 = vadd.f32 0.0, %v2662
      %v2664 = vpop.f32.mrb[0].mxu0
      %v2665 = vpop.f32.mrb[0].mxu0
      %v2666 = vadd.f32 0.0, %v2665
      %v2667 = vpop.f32.mrb[0].mxu0
      %2668 = vmatprep.mubr.bf16.mxu0 0
      %2669 = vmatmul.mubr.bf16.gmra.mrb[0].mxu0 %v2456
      %v2670 = vpop.f32.mrb[0].mxu0
      %v2671 = vadd.f32 0.0, %v2670
      %v2672 = vpop.f32.mrb[0].mxu0
      %v2673 = vpop.f32.mrb[0].mxu0
      %v2674 = vadd.f32 0.0, %v2673
      %v2675 = vpop.f32.mrb[0].mxu0
      %2676 = vmatprep.mubr.bf16.mxu0 0
      %2677 = vmatmul.mubr.bf16.gmra.mrb[0].mxu0 %v2459
      %v2678 = vpop.f32.mrb[0].mxu0
      %v2679 = vadd.f32 0.0, %v2678
      %v2680 = vpop.f32.mrb[0].mxu0
      %v2681 = vpop.f32.mrb[0].mxu0
      %v2682 = vadd.f32 0.0, %v2681
      %v2683 = vpop.f32.mrb[0].mxu0
      %2684 = vmatprep.mubr.bf16.mxu0 0
      %2685 = vmatmul.mubr.bf16.gmra.mrb[0].mxu0 %v2462
      %v2686 = vpop.f32.mrb[0].mxu0
      %v2687 = vadd.f32 0.0, %v2686
      %v2688 = vpop.f32.mrb[0].mxu0
      %v2689 = vpop.f32.mrb[0].mxu0
      %v2690 = vadd.f32 0.0, %v2689
      %v2691 = vpop.f32.mrb[0].mxu0
      %2692 = vmatprep.mubr.bf16.mxu0 0
      %2693 = vmatmul.mubr.bf16.gmra.mrb[0].mxu0 %v2465
      %v2694 = vpop.f32.mrb[0].mxu0
      %v2695 = vadd.f32 0.0, %v2694
      %v2696 = vpop.f32.mrb[0].mxu0
      %v2697 = vpop.f32.mrb[0].mxu0
      %v2698 = vadd.f32 0.0, %v2697
      %v2699 = vpop.f32.mrb[0].mxu0
      %2700 = vmatprep.mubr.bf16.mxu0 0
      %2701 = vmatmul.mubr.bf16.gmra.mrb[0].mxu0 %v2468
      %v2702 = vpop.f32.mrb[0].mxu0
      %v2703 = vadd.f32 0.0, %v2702
      %v2704 = vpop.f32.mrb[0].mxu0
      %v2705 = vpop.f32.mrb[0].mxu0
      %v2706 = vadd.f32 0.0, %v2705
      %v2707 = vpop.f32.mrb[0].mxu0
      %2708 = vmatprep.mubr.bf16.mxu0 0
      %2709 = vmatmul.mubr.bf16.gmra.mrb[0].mxu0 %v2471
      %v2710 = vpop.f32.mrb[0].mxu0
      %v2711 = vadd.f32 0.0, %v2710
      %v2712 = vpop.f32.mrb[0].mxu0
      %v2713 = vpop.f32.mrb[0].mxu0
      %v2714 = vadd.f32 0.0, %v2713
      %v2715 = vpop.f32.mrb[0].mxu0
      %2716 = vmatprep.mubr.bf16.mxu0 0
      %2717 = vmatmul.mubr.bf16.gmra.mrb[0].mxu0 %v2474
      %v2718 = vpop.f32.mrb[0].mxu0
      %v2719 = vadd.f32 0.0, %v2718
      %v2720 = vpop.f32.mrb[0].mxu0
      %v2721 = vpop.f32.mrb[0].mxu0
      %v2722 = vadd.f32 0.0, %v2721
      %v2723 = vpop.f32.mrb[0].mxu0
      %2724 = vmatprep.mubr.bf16.mxu0 0
      %2725 = vmatmul.mubr.bf16.gmra.mrb[0].mxu0 %v2477
      %v2726 = vpop.f32.mrb[0].mxu0
      %v2727 = vadd.f32 0.0, %v2726
      %v2728 = vpop.f32.mrb[0].mxu0
      %v2729 = vpop.f32.mrb[0].mxu0
      %v2730 = vadd.f32 0.0, %v2729
      %v2731 = vpop.f32.mrb[0].mxu0
      %2732 = vmatprep.mubr.bf16.mxu0 0
      %2733 = vmatmul.mubr.bf16.gmra.mrb[0].mxu0 %v2480
      %v2734 = vpop.f32.mrb[0].mxu0
      %v2735 = vadd.f32 0.0, %v2734
      %v2736 = vpop.f32.mrb[0].mxu0
      %v2737 = vpop.f32.mrb[0].mxu0
      %v2738 = vadd.f32 0.0, %v2737
      %v2739 = vpop.f32.mrb[0].mxu0
      %2740 = vmatprep.mubr.bf16.mxu0 0
      %2741 = vmatmul.mubr.bf16.gmra.mrb[0].mxu0 %v2483
      %v2742 = vpop.f32.mrb[0].mxu0
      %v2743 = vadd.f32 0.0, %v2742
      %v2744 = vpop.f32.mrb[0].mxu0
      %v2745 = vpop.f32.mrb[0].mxu0
      %v2746 = vadd.f32 0.0, %v2745
      %v2747 = vpop.f32.mrb[0].mxu0
      %2748 = vmatprep.mubr.bf16.mxu0 0
      %2749 = vmatmul.mubr.bf16.gmra.mrb[0].mxu0 %v2486
      %v2750 = vpop.f32.mrb[0].mxu0
      %v2751 = vadd.f32 0.0, %v2750
      %v2752 = vpop.f32.mrb[0].mxu0
      %v2753 = vpop.f32.mrb[0].mxu0
      %v2754 = vadd.f32 0.0, %v2753
      %v2755 = vpop.f32.mrb[0].mxu0
      %2756 = vmatprep.mubr.bf16.mxu0 0
      %2757 = vmatmul.mubr.bf16.gmra.mrb[0].mxu0 %v2489
      %v2758 = vpop.f32.mrb[0].mxu0
      %v2759 = vadd.f32 0.0, %v2758
      %v2760 = vpop.f32.mrb[0].mxu0
      %v2761 = vpop.f32.mrb[0].mxu0
      %v2762 = vadd.f32 0.0, %v2761
      %v2763 = vpop.f32.mrb[0].mxu0
      %2764 = vmatprep.mubr.bf16.mxu0 0
      %2765 = vmatmul.mubr.bf16.gmra.mrb[0].mxu0 %v2492
      %v2766 = vpop.f32.mrb[0].mxu0
      %v2767 = vadd.f32 0.0, %v2766
      %v2768 = vpop.f32.mrb[0].mxu0
      %v2769 = vpop.f32.mrb[0].mxu0
      %v2770 = vadd.f32 0.0, %v2769
      %v2771 = vpop.f32.mrb[0].mxu0
      %2772 = vmatprep.mubr.bf16.mxu0 0
      %2773 = vmatmul.mubr.bf16.gmra.mrb[0].mxu0 %v2495
      %v2774 = vpop.f32.mrb[0].mxu0
      %v2775 = vadd.f32 0.0, %v2774
      %v2776 = vpop.f32.mrb[0].mxu0
      %v2777 = vpop.f32.mrb[0].mxu0
      %v2778 = vadd.f32 0.0, %v2777
      %v2779 = vpop.f32.mrb[0].mxu0
      %2780 = vmatprep.mubr.bf16.mxu0 0
      %2781 = vmatmul.mubr.bf16.gmra.mrb[0].mxu0 %v2498
      %v2782 = vpop.f32.mrb[0].mxu0
      %v2783 = vadd.f32 0.0, %v2782
      %v2784 = vpop.f32.mrb[0].mxu0
      %v2785 = vpop.f32.mrb[0].mxu0
      %v2786 = vadd.f32 0.0, %v2785
      %v2787 = vpop.f32.mrb[0].mxu0
      %2788 = vdwg.mxu0
      %v2789 = vlaneseq
      %v2790 = vand.u32 %v2789, 127
      %vm2791 = vcmp.lt.s32.totalorder %v2790, 3
      %2793 = vset.pattern.permute.xlu0 0
      %2794 = vperm.xlu0 %2793, %v1476
      %v2795 = vpop.permute.xlu0 %2794
      %2798 = vset.pattern.permute.xlu0 0
      %2799 = vperm.xlu0 %2798, %v1478
      %v2800 = vpop.permute.xlu0 %2799
      %2803 = vset.pattern.permute.xlu0 0
      %2804 = vperm.xlu0 %2803, %v1480
      %v2805 = vpop.permute.xlu0 %2804
      %2808 = vset.pattern.permute.xlu0 0
      %2809 = vperm.xlu0 %2808, %v1482
      %v2810 = vpop.permute.xlu0 %2809
      %2813 = vset.pattern.permute.xlu0 0
      %2814 = vperm.xlu0 %2813, %v1484
      %v2815 = vpop.permute.xlu0 %2814
      %2818 = vset.pattern.permute.xlu0 0
      %2819 = vperm.xlu0 %2818, %v1486
      %v2820 = vpop.permute.xlu0 %2819
      %2823 = vset.pattern.permute.xlu0 0
      %2824 = vperm.xlu0 %2823, %v1488
      %v2825 = vpop.permute.xlu0 %2824
      %2828 = vset.pattern.permute.xlu0 0
      %2829 = vperm.xlu0 %2828, %v1490
      %v2830 = vpop.permute.xlu0 %2829
      %2833 = vset.pattern.permute.xlu0 0
      %2834 = vperm.xlu0 %2833, %v1492
      %v2835 = vpop.permute.xlu0 %2834
      %2838 = vset.pattern.permute.xlu0 0
      %2839 = vperm.xlu0 %2838, %v1494
      %v2840 = vpop.permute.xlu0 %2839
      %2843 = vset.pattern.permute.xlu0 0
      %2844 = vperm.xlu0 %2843, %v1496
      %v2845 = vpop.permute.xlu0 %2844
      %2848 = vset.pattern.permute.xlu0 0
      %2849 = vperm.xlu0 %2848, %v1498
      %v2850 = vpop.permute.xlu0 %2849
      %2853 = vset.pattern.permute.xlu0 0
      %2854 = vperm.xlu0 %2853, %v1500
      %v2855 = vpop.permute.xlu0 %2854
      %2858 = vset.pattern.permute.xlu0 0
      %2859 = vperm.xlu0 %2858, %v1502
      %v2860 = vpop.permute.xlu0 %2859
      %2863 = vset.pattern.permute.xlu0 0
      %2864 = vperm.xlu0 %2863, %v1504
      %v2865 = vpop.permute.xlu0 %2864
      %2868 = vset.pattern.permute.xlu0 0
      %2869 = vperm.xlu0 %2868, %v1506
      %v2870 = vpop.permute.xlu0 %2869
      %2873 = vset.pattern.permute.xlu0 0
      %2874 = vperm.xlu0 %2873, %v1508
      %v2875 = vpop.permute.xlu0 %2874
      %2878 = vset.pattern.permute.xlu0 0
      %2879 = vperm.xlu0 %2878, %v1510
      %v2880 = vpop.permute.xlu0 %2879
      %2883 = vset.pattern.permute.xlu0 0
      %2884 = vperm.xlu0 %2883, %v1512
      %v2885 = vpop.permute.xlu0 %2884
      %2888 = vset.pattern.permute.xlu0 0
      %2889 = vperm.xlu0 %2888, %v1514
      %v2890 = vpop.permute.xlu0 %2889
      %2893 = vset.pattern.permute.xlu0 0
      %2894 = vperm.xlu0 %2893, %v1516
      %v2895 = vpop.permute.xlu0 %2894
      %2898 = vset.pattern.permute.xlu0 0
      %2899 = vperm.xlu0 %2898, %v1518
      %v2900 = vpop.permute.xlu0 %2899
      %2903 = vset.pattern.permute.xlu0 0
      %2904 = vperm.xlu0 %2903, %v1520
      %v2905 = vpop.permute.xlu0 %2904
      %2908 = vset.pattern.permute.xlu0 0
      %2909 = vperm.xlu0 %2908, %v1522
      %v2910 = vpop.permute.xlu0 %2909
      %2913 = vset.pattern.permute.xlu0 0
      %2914 = vperm.xlu0 %2913, %v1524
      %v2915 = vpop.permute.xlu0 %2914
      %2918 = vset.pattern.permute.xlu0 0
      %2919 = vperm.xlu0 %2918, %v1526
      %v2920 = vpop.permute.xlu0 %2919
      %2923 = vset.pattern.permute.xlu0 0
      %2924 = vperm.xlu0 %2923, %v1528
      %v2925 = vpop.permute.xlu0 %2924
      %2928 = vset.pattern.permute.xlu0 0
      %2929 = vperm.xlu0 %2928, %v1530
      %v2930 = vpop.permute.xlu0 %2929
      %2933 = vset.pattern.permute.xlu0 0
      %2934 = vperm.xlu0 %2933, %v1532
      %v2935 = vpop.permute.xlu0 %2934
      %2938 = vset.pattern.permute.xlu0 0
      %2939 = vperm.xlu0 %2938, %v1534
      %v2940 = vpop.permute.xlu0 %2939
      %2943 = vset.pattern.permute.xlu0 0
      %2944 = vperm.xlu0 %2943, %v1536
      %v2945 = vpop.permute.xlu0 %2944
      %2948 = vset.pattern.permute.xlu0 0
      %2949 = vperm.xlu0 %2948, %v1538
      %v2950 = vpop.permute.xlu0 %2949
      %2953 = vset.pattern.permute.xlu0 0
      %2954 = vperm.xlu0 %2953, %v1540
      %v2955 = vpop.permute.xlu0 %2954
      %2958 = vset.pattern.permute.xlu0 0
      %2959 = vperm.xlu0 %2958, %v1542
      %v2960 = vpop.permute.xlu0 %2959
      %2963 = vset.pattern.permute.xlu0 0
      %2964 = vperm.xlu0 %2963, %v1544
      %v2965 = vpop.permute.xlu0 %2964
      %2968 = vset.pattern.permute.xlu0 0
      %2969 = vperm.xlu0 %2968, %v1546
      %v2970 = vpop.permute.xlu0 %2969
      %2973 = vset.pattern.permute.xlu0 0
      %2974 = vperm.xlu0 %2973, %v1548
      %v2975 = vpop.permute.xlu0 %2974
      %2978 = vset.pattern.permute.xlu0 0
      %2979 = vperm.xlu0 %2978, %v1550
      %v2980 = vpop.permute.xlu0 %2979
      %2983 = vset.pattern.permute.xlu0 0
      %2984 = vperm.xlu0 %2983, %v1552
      %v2985 = vpop.permute.xlu0 %2984
      %2988 = vset.pattern.permute.xlu0 0
      %2989 = vperm.xlu0 %2988, %v1554
      %v2990 = vpop.permute.xlu0 %2989
      %2993 = vset.pattern.permute.xlu0 0
      %2994 = vperm.xlu0 %2993, %v1556
      %v2995 = vpop.permute.xlu0 %2994
      %2998 = vset.pattern.permute.xlu0 0
      %2999 = vperm.xlu0 %2998, %v1558
      %v3000 = vpop.permute.xlu0 %2999
      %3003 = vset.pattern.permute.xlu0 0
      %3004 = vperm.xlu0 %3003, %v1560
      %v3005 = vpop.permute.xlu0 %3004
      %3008 = vset.pattern.permute.xlu0 0
      %3009 = vperm.xlu0 %3008, %v1562
      %v3010 = vpop.permute.xlu0 %3009
      %3013 = vset.pattern.permute.xlu0 0
      %3014 = vperm.xlu0 %3013, %v1564
      %v3015 = vpop.permute.xlu0 %3014
      %3018 = vset.pattern.permute.xlu0 0
      %3019 = vperm.xlu0 %3018, %v1566
      %v3020 = vpop.permute.xlu0 %3019
      %3023 = vset.pattern.permute.xlu0 0
      %3024 = vperm.xlu0 %3023, %v1568
      %v3025 = vpop.permute.xlu0 %3024
      %3028 = vset.pattern.permute.xlu0 0
      %3029 = vperm.xlu0 %3028, %v1570
      %v3030 = vpop.permute.xlu0 %3029
      %3033 = vset.pattern.permute.xlu0 0
      %3034 = vperm.xlu0 %3033, %v1572
      %v3035 = vpop.permute.xlu0 %3034
      %3038 = vset.pattern.permute.xlu0 0
      %3039 = vperm.xlu0 %3038, %v1574
      %v3040 = vpop.permute.xlu0 %3039
      %3043 = vset.pattern.permute.xlu0 0
      %3044 = vperm.xlu0 %3043, %v1576
      %v3045 = vpop.permute.xlu0 %3044
      %3048 = vset.pattern.permute.xlu0 0
      %3049 = vperm.xlu0 %3048, %v1578
      %v3050 = vpop.permute.xlu0 %3049
      %3053 = vset.pattern.permute.xlu0 0
      %3054 = vperm.xlu0 %3053, %v1580
      %v3055 = vpop.permute.xlu0 %3054
      %3058 = vset.pattern.permute.xlu0 0
      %3059 = vperm.xlu0 %3058, %v1582
      %v3060 = vpop.permute.xlu0 %3059
      %3063 = vset.pattern.permute.xlu0 0
      %3064 = vperm.xlu0 %3063, %v1584
      %v3065 = vpop.permute.xlu0 %3064
      %3068 = vset.pattern.permute.xlu0 0
      %3069 = vperm.xlu0 %3068, %v1586
      %v3070 = vpop.permute.xlu0 %3069
      %3073 = vset.pattern.permute.xlu0 0
      %3074 = vperm.xlu0 %3073, %v1588
      %v3075 = vpop.permute.xlu0 %3074
      %3078 = vset.pattern.permute.xlu0 0
      %3079 = vperm.xlu0 %3078, %v1590
      %v3080 = vpop.permute.xlu0 %3079
      %3083 = vset.pattern.permute.xlu0 0
      %3084 = vperm.xlu0 %3083, %v1592
      %v3085 = vpop.permute.xlu0 %3084
      %3088 = vset.pattern.permute.xlu0 0
      %3089 = vperm.xlu0 %3088, %v1594
      %v3090 = vpop.permute.xlu0 %3089
      %3093 = vset.pattern.permute.xlu0 0
      %3094 = vperm.xlu0 %3093, %v1596
      %v3095 = vpop.permute.xlu0 %3094
      %3098 = vset.pattern.permute.xlu0 0
      %3099 = vperm.xlu0 %3098, %v1598
      %v3100 = vpop.permute.xlu0 %3099
      %3103 = vset.pattern.permute.xlu0 0
      %3104 = vperm.xlu0 %3103, %v1600
      %v3105 = vpop.permute.xlu0 %3104
      %3108 = vset.pattern.permute.xlu0 0
      %3109 = vperm.xlu0 %3108, %v1602
      %v3110 = vpop.permute.xlu0 %3109
      %v3112 = vsel %vm2791, %v2535, %v2795
      %v3113 = vsel %vm2791, %v2538, %v2800
      %v3114 = vsel %vm2791, %v2543, %v2805
      %v3115 = vsel %vm2791, %v2546, %v2810
      %v3116 = vsel %vm2791, %v2551, %v2815
      %v3117 = vsel %vm2791, %v2554, %v2820
      %v3118 = vsel %vm2791, %v2559, %v2825
      %v3119 = vsel %vm2791, %v2562, %v2830
      %v3120 = vsel %vm2791, %v2567, %v2835
      %v3121 = vsel %vm2791, %v2570, %v2840
      %v3122 = vsel %vm2791, %v2575, %v2845
      %v3123 = vsel %vm2791, %v2578, %v2850
      %v3124 = vsel %vm2791, %v2583, %v2855
      %v3125 = vsel %vm2791, %v2586, %v2860
      %v3126 = vsel %vm2791, %v2591, %v2865
      %v3127 = vsel %vm2791, %v2594, %v2870
      %v3128 = vsel %vm2791, %v2599, %v2875
      %v3129 = vsel %vm2791, %v2602, %v2880
      %v3130 = vsel %vm2791, %v2607, %v2885
      %v3131 = vsel %vm2791, %v2610, %v2890
      %v3132 = vsel %vm2791, %v2615, %v2895
      %v3133 = vsel %vm2791, %v2618, %v2900
      %v3134 = vsel %vm2791, %v2623, %v2905
      %v3135 = vsel %vm2791, %v2626, %v2910
      %v3136 = vsel %vm2791, %v2631, %v2915
      %v3137 = vsel %vm2791, %v2634, %v2920
      %v3138 = vsel %vm2791, %v2639, %v2925
      %v3139 = vsel %vm2791, %v2642, %v2930
      %v3140 = vsel %vm2791, %v2647, %v2935
      %v3141 = vsel %vm2791, %v2650, %v2940
      %v3142 = vsel %vm2791, %v2655, %v2945
      %v3143 = vsel %vm2791, %v2658, %v2950
      %v3144 = vsel %vm2791, %v2663, %v2955
      %v3145 = vsel %vm2791, %v2666, %v2960
      %v3146 = vsel %vm2791, %v2671, %v2965
      %v3147 = vsel %vm2791, %v2674, %v2970
      %v3148 = vsel %vm2791, %v2679, %v2975
      %v3149 = vsel %vm2791, %v2682, %v2980
      %v3150 = vsel %vm2791, %v2687, %v2985
      %v3151 = vsel %vm2791, %v2690, %v2990
      %v3152 = vsel %vm2791, %v2695, %v2995
      %v3153 = vsel %vm2791, %v2698, %v3000
      %v3154 = vsel %vm2791, %v2703, %v3005
      %v3155 = vsel %vm2791, %v2706, %v3010
      %v3156 = vsel %vm2791, %v2711, %v3015
      %v3157 = vsel %vm2791, %v2714, %v3020
      %v3158 = vsel %vm2791, %v2719, %v3025
      %v3159 = vsel %vm2791, %v2722, %v3030
      %v3160 = vsel %vm2791, %v2727, %v3035
      %v3161 = vsel %vm2791, %v2730, %v3040
      %v3162 = vsel %vm2791, %v2735, %v3045
      %v3163 = vsel %vm2791, %v2738, %v3050
      %v3164 = vsel %vm2791, %v2743, %v3055
      %v3165 = vsel %vm2791, %v2746, %v3060
      %v3166 = vsel %vm2791, %v2751, %v3065
      %v3167 = vsel %vm2791, %v2754, %v3070
      %v3168 = vsel %vm2791, %v2759, %v3075
      %v3169 = vsel %vm2791, %v2762, %v3080
      %v3170 = vsel %vm2791, %v2767, %v3085
      %v3171 = vsel %vm2791, %v2770, %v3090
      %v3172 = vsel %vm2791, %v2775, %v3095
      %v3173 = vsel %vm2791, %v2778, %v3100
      %v3174 = vsel %vm2791, %v2783, %v3105
      %v3175 = vsel %vm2791, %v2786, %v3110
      %vm3176 = vcmask 31744
      %3177 = vst.msk [vmem:[%s253] sm:$0xff] %vm3176, %v3112
      %3178 = vst.msk [vmem:[%s253 + $0x8] sm:$0xff] %vm3176, %v3113
      %3179 = vst.msk [vmem:[%s253 + $0x10] sm:$0xff] %vm3176, %v3114
      %3180 = vst.msk [vmem:[%s253 + $0x18] sm:$0xff] %vm3176, %v3115
      %3181 = vst.msk [vmem:[%s253 + $0x20] sm:$0xff] %vm3176, %v3116
      %3182 = vst.msk [vmem:[%s253 + $0x28] sm:$0xff] %vm3176, %v3117
      %3183 = vst.msk [vmem:[%s253 + $0x30] sm:$0xff] %vm3176, %v3118
      %3184 = vst.msk [vmem:[%s253 + $0x38] sm:$0xff] %vm3176, %v3119
      %3185 = vst.msk [vmem:[%s253 + $0x40] sm:$0xff] %vm3176, %v3120
      %3186 = vst.msk [vmem:[%s253 + $0x48] sm:$0xff] %vm3176, %v3121
      %3187 = vst.msk [vmem:[%s253 + $0x50] sm:$0xff] %vm3176, %v3122
      %3188 = vst.msk [vmem:[%s253 + $0x58] sm:$0xff] %vm3176, %v3123
      %3189 = vst.msk [vmem:[%s253 + $0x60] sm:$0xff] %vm3176, %v3124
      %3190 = vst.msk [vmem:[%s253 + $0x68] sm:$0xff] %vm3176, %v3125
      %3191 = vst.msk [vmem:[%s253 + $0x70] sm:$0xff] %vm3176, %v3126
      %3192 = vst.msk [vmem:[%s253 + $0x78] sm:$0xff] %vm3176, %v3127
      %3193 = vst.msk [vmem:[%s253 + $0x80] sm:$0xff] %vm3176, %v3128
      %3194 = vst.msk [vmem:[%s253 + $0x88] sm:$0xff] %vm3176, %v3129
      %3195 = vst.msk [vmem:[%s253 + $0x90] sm:$0xff] %vm3176, %v3130
      %3196 = vst.msk [vmem:[%s253 + $0x98] sm:$0xff] %vm3176, %v3131
      %3197 = vst.msk [vmem:[%s253 + $0xa0] sm:$0xff] %vm3176, %v3132
      %3198 = vst.msk [vmem:[%s253 + $0xa8] sm:$0xff] %vm3176, %v3133
      %3199 = vst.msk [vmem:[%s253 + $0xb0] sm:$0xff] %vm3176, %v3134
      %3200 = vst.msk [vmem:[%s253 + $0xb8] sm:$0xff] %vm3176, %v3135
      %3201 = vst.msk [vmem:[%s253 + $0xc0] sm:$0xff] %vm3176, %v3136
      %3202 = vst.msk [vmem:[%s253 + $0xc8] sm:$0xff] %vm3176, %v3137
      %3203 = vst.msk [vmem:[%s253 + $0xd0] sm:$0xff] %vm3176, %v3138
      %3204 = vst.msk [vmem:[%s253 + $0xd8] sm:$0xff] %vm3176, %v3139
      %3205 = vst.msk [vmem:[%s253 + $0xe0] sm:$0xff] %vm3176, %v3140
      %3206 = vst.msk [vmem:[%s253 + $0xe8] sm:$0xff] %vm3176, %v3141
      %3207 = vst.msk [vmem:[%s253 + $0xf0] sm:$0xff] %vm3176, %v3142
      %3208 = vst.msk [vmem:[%s253 + $0xf8] sm:$0xff] %vm3176, %v3143
      %3209 = vst.msk [vmem:[%s253 + $0x100] sm:$0xff] %vm3176, %v3144
      %3210 = vst.msk [vmem:[%s253 + $0x108] sm:$0xff] %vm3176, %v3145
      %3211 = vst.msk [vmem:[%s253 + $0x110] sm:$0xff] %vm3176, %v3146
      %3212 = vst.msk [vmem:[%s253 + $0x118] sm:$0xff] %vm3176, %v3147
      %3213 = vst.msk [vmem:[%s253 + $0x120] sm:$0xff] %vm3176, %v3148
      %3214 = vst.msk [vmem:[%s253 + $0x128] sm:$0xff] %vm3176, %v3149
      %3215 = vst.msk [vmem:[%s253 + $0x130] sm:$0xff] %vm3176, %v3150
      %3216 = vst.msk [vmem:[%s253 + $0x138] sm:$0xff] %vm3176, %v3151
      %3217 = vst.msk [vmem:[%s253 + $0x140] sm:$0xff] %vm3176, %v3152
      %3218 = vst.msk [vmem:[%s253 + $0x148] sm:$0xff] %vm3176, %v3153
      %3219 = vst.msk [vmem:[%s253 + $0x150] sm:$0xff] %vm3176, %v3154
      %3220 = vst.msk [vmem:[%s253 + $0x158] sm:$0xff] %vm3176, %v3155
      %3221 = vst.msk [vmem:[%s253 + $0x160] sm:$0xff] %vm3176, %v3156
      %3222 = vst.msk [vmem:[%s253 + $0x168] sm:$0xff] %vm3176, %v3157
      %3223 = vst.msk [vmem:[%s253 + $0x170] sm:$0xff] %vm3176, %v3158
      %3224 = vst.msk [vmem:[%s253 + $0x178] sm:$0xff] %vm3176, %v3159
      %3225 = vst.msk [vmem:[%s253 + $0x180] sm:$0xff] %vm3176, %v3160
      %3226 = vst.msk [vmem:[%s253 + $0x188] sm:$0xff] %vm3176, %v3161
      %3227 = vst.msk [vmem:[%s253 + $0x190] sm:$0xff] %vm3176, %v3162
      %3228 = vst.msk [vmem:[%s253 + $0x198] sm:$0xff] %vm3176, %v3163
      %3229 = vst.msk [vmem:[%s253 + $0x1a0] sm:$0xff] %vm3176, %v3164
      %3230 = vst.msk [vmem:[%s253 + $0x1a8] sm:$0xff] %vm3176, %v3165
      %3231 = vst.msk [vmem:[%s253 + $0x1b0] sm:$0xff] %vm3176, %v3166
      %3232 = vst.msk [vmem:[%s253 + $0x1b8] sm:$0xff] %vm3176, %v3167
      %3233 = vst.msk [vmem:[%s253 + $0x1c0] sm:$0xff] %vm3176, %v3168
      %3234 = vst.msk [vmem:[%s253 + $0x1c8] sm:$0xff] %vm3176, %v3169
      %3235 = vst.msk [vmem:[%s253 + $0x1d0] sm:$0xff] %vm3176, %v3170
      %3236 = vst.msk [vmem:[%s253 + $0x1d8] sm:$0xff] %vm3176, %v3171
      %3237 = vst.msk [vmem:[%s253 + $0x1e0] sm:$0xff] %vm3176, %v3172
      %3238 = vst.msk [vmem:[%s253 + $0x1e8] sm:$0xff] %vm3176, %v3173
      %3239 = vst.msk [vmem:[%s253 + $0x1f0] sm:$0xff] %vm3176, %v3174
      %3240 = vst.msk [vmem:[%s253 + $0x1f8] sm:$0xff] %vm3176, %v3175
      %s3241 = smul.u32 64, %s17
      %p3242 = scmp.lt.s32.totalorder %s3241, 255
      %s3243 = scalar_select %p3242, %s3241, 255
      %s3244 = smul.addr %s3243, 8
      %s3245 = scalar_lea.vmem %s6, %s3244
      // Predicated region
      $region45: #{tpu_custom_call.1} parent=43 // pred_check
        %p3246 = pneg %p166
      $region46: #{tpu_custom_call.1} parent=43 // pred_check_branch
        %3248 = sbr.rel (%p3246) target = $region48
      $region47: #{tpu_custom_call.1} parent=43 // pred_region
        %s3249 = smul.u32 64, %s17
      $region48: #{tpu_custom_call.1} parent=43 // pred_fallthru
        _
    $region44: #{tpu_custom_call.1} parent=5 // pred_fallthru
      _
    %p3250 = scmp.le.s32.totalorder 2, %s12
    // Predicated region
    $region49: #{tpu_custom_call.1} parent=5 // pred_check
      %p3251 = pneg %p3250
    $region50: #{tpu_custom_call.1} parent=5 // pred_check_branch
      %3253 = sbr.rel (%p3251) target = $region52
    $region51: #{tpu_custom_call.1} parent=5 // pred_region
      %s3254 = ssub.s32 %s12, 2
      // Predicated region
      $region53: #{tpu_custom_call.1} parent=51 // pred_check
        %p3255 = pneg %p172
      $region54: #{tpu_custom_call.1} parent=51 // pred_check_branch
        %3257 = sbr.rel (%p3255) target = $region56
      $region55: #{tpu_custom_call.1} parent=51 // pred_region
        %s3258 = smul.u32 64, %s18
        %p3259 = scmp.lt.s32.totalorder %s3258, 255
        %s3260 = scalar_select %p3259, %s3258, 255
        %s3261 = smul.addr %s3260, 8
        %s3262 = scalar_lea.vmem %s6, %s3261
      $region56: #{tpu_custom_call.1} parent=51 // pred_fallthru
        _
    $region52: #{tpu_custom_call.1} parent=5 // pred_fallthru
      _
  $region6: #{tpu_custom_call.1} parent=0 // loop_footer
    %s16 = sadd.s32 1, %s12
  $region7: #{tpu_custom_call.1} parent=0 // loop_footer_branch
    %11 = sbr.rel target = $region3
  $region8: #{tpu_custom_call.1} parent=0 // loop_exit
    _

</llo_original>
